<compile_context>
chip_gen: v7x
topology: tpu7x:2x2x1
jax: 0.10.0
libtpu: 0.0.40
codegen_flags: <defaults>
</compile_context>

<pallas_src>
import math
from functools import partial

import jax
import jax.numpy as jnp
from jax.experimental import pallas as pl
from jax.experimental.pallas import tpu as pltpu

EXPANSION = 4                     # resnet Bottleneck expansion
LANE = 128                        # TPU lane width
MAX_TN = 1024                     # largest lane tile we will try
VMEM_LIMIT = 32 * 1024 * 1024     # explicit scoped limit, safe on v5e/v6e/v7x
VMEM_BUDGET = 24 * 1024 * 1024    # tile-sizing budget (headroom under the limit)


def _round_up(x, m):
    return (x + m - 1) // m * m


def _pick_lane_tile(M, K, S, has_res):
    """Largest lane tile (multiple of 128) whose double-buffered working set
    fits the VMEM budget, plus the padded S extent."""
    full = _round_up(S, LANE)
    tn = LANE
    for cand in (MAX_TN, 512, 256, 128):
        tn = min(cand, full)
        # 2x (X tile bf16 + out tile bf16 + optional residual tile bf16) + W + bias
        fp = (2 * (K * tn * 2 + M * tn * 2 + (M * tn * 2 if has_res else 0))
              + M * K * 2 + M * 4)
        if fp <= VMEM_BUDGET or tn == LANE:
            break
    return tn, _round_up(S, tn)


# -----------------------------------------------------------------------------
# Pallas kernels
# -----------------------------------------------------------------------------
def _mm_kernel(*refs, relu, has_res):
    """O = W @ X + b (+ residual) (+ ReLU).  bf16 in, f32 MXU acc, bf16/f32 out."""
    if has_res:
        w_ref, x_ref, b_ref, r_ref, o_ref = refs
    else:
        w_ref, x_ref, b_ref, o_ref = refs
        r_ref = None
    acc = jnp.dot(w_ref[...], x_ref[...], preferred_element_type=jnp.float32)
    acc = acc + b_ref[...].astype(jnp.float32)      # [tm,1] or [1,tn] broadcast
    if r_ref is not None:
        acc = acc + r_ref[...].astype(jnp.float32)  # fused residual add
    if relu:
        acc = jnp.maximum(acc, 0.0)
    o_ref[...] = acc.astype(o_ref.dtype)


def lane_matmul(w, x, b, *, relu=False, residual=None, bias_per_row=True,
                out_dtype=jnp.bfloat16):
    """Lane-dense matmul O[M, S] = W[M, K] @ X[K, S] + b (+res) (+ReLU).

    W, X, residual are bf16; accumulation is f32 on the MXU; output dtype is
    `out_dtype` (bf16 for conv activations, f32 for the final Linear).
    Grid is 2-D: (M tiles, lane tiles), both parallel.
    """
    M, K = w.shape
    K2, S = x.shape
    assert K == K2, (K, K2)
    tn, s_pad = _pick_lane_tile(M, K, S, residual is not None)
    n_tiles = s_pad // tn
    tm = 256 if (M > 256 and M % 256 == 0) else M
    m_tiles = M // tm

    if s_pad != S:
        x = jnp.pad(x, ((0, 0), (0, s_pad - S)))
    if not bias_per_row and b.shape[1] != s_pad:
        b = jnp.pad(b, ((0, 0), (0, s_pad - b.shape[1])))

    in_specs = [
        pl.BlockSpec((tm, K), lambda i, j: (i, 0)),        # weights / lhs
        pl.BlockSpec((K, tn), lambda i, j: (0, j)),        # activations / rhs
        (pl.BlockSpec((tm, 1), lambda i, j: (i, 0)) if bias_per_row
         else pl.BlockSpec((1, tn), lambda i, j: (0, j))),  # bias
    ]
    args = [w, x, b]
    if residual is not None:
        r = residual
        if s_pad != S:
            r = jnp.pad(r, ((0, 0), (0, s_pad - S)))
        in_specs.append(pl.BlockSpec((tm, tn), lambda i, j: (i, j)))
        args.append(r)

    out_itemsize = 2 if out_dtype == jnp.bfloat16 else 4
    bytes_accessed = (M * K * 2 + K * s_pad * 2 + b.size * 4
                      + M * s_pad * out_itemsize
                      + (M * s_pad * 2 if residual is not None else 0))
    out = pl.pallas_call(
        partial(_mm_kernel, relu=relu, has_res=residual is not None),
        out_shape=jax.ShapeDtypeStruct((M, s_pad), out_dtype),
        grid=(m_tiles, n_tiles),
        in_specs=in_specs,
        out_specs=pl.BlockSpec((tm, tn), lambda i, j: (i, j)),
        compiler_params=pltpu.CompilerParams(
            dimension_semantics=("parallel", "parallel"),
            vmem_limit_bytes=VMEM_LIMIT),
        cost_estimate=pl.CostEstimate(
            flops=2 * M * K * s_pad, transcendentals=0,
            bytes_accessed=int(bytes_accessed)),
    )(*args)
    if s_pad != S:
        out = out[:, :S]
    return out


def _maxpool_kernel(x_ref, o_ref):
    m = x_ref[0]
    for t in range(1, x_ref.shape[0]):
        m = jnp.maximum(m, x_ref[t])
    o_ref[...] = m


def maxpool_3x3_s2_p1(x):
    """MaxPool2d(kernel=3, stride=2, padding=1) on channel-major bf16 [C,B,H,W]."""
    C, B, H, W = x.shape
    k, s, p = 3, 2, 1
    Ho = (H + 2 * p - k) // s + 1
    Wo = (W + 2 * p - k) // s + 1
    xp = jnp.pad(x, ((0, 0), (0, 0), (p, p), (p, p)), constant_values=-jnp.inf)
    taps = [xp[:, :, i:i + s * Ho:s, j:j + s * Wo:s]
            for i in range(k) for j in range(k)]
    stacked = jnp.stack(taps, axis=0).reshape(k * k, C, B * Ho * Wo)
    S = B * Ho * Wo
    tn = min(512, _round_up(S, LANE))
    s_pad = _round_up(S, tn)
    if s_pad != S:
        stacked = jnp.pad(stacked, ((0, 0), (0, 0), (0, s_pad - S)),
                          constant_values=-jnp.inf)
    out = pl.pallas_call(
        _maxpool_kernel,
        out_shape=jax.ShapeDtypeStruct((C, s_pad), x.dtype),
        grid=(s_pad // tn,),
        in_specs=[pl.BlockSpec((k * k, C, tn), lambda j: (0, 0, j))],
        out_specs=pl.BlockSpec((C, tn), lambda j: (0, j)),
        compiler_params=pltpu.CompilerParams(
            dimension_semantics=("parallel",),
            vmem_limit_bytes=VMEM_LIMIT),
    )(stacked)
    if s_pad != S:
        out = out[:, :S]
    return out.reshape(C, B, Ho, Wo)


# -----------------------------------------------------------------------------
# Convolutions on channel-major bf16 activations (BN folded, ReLU/res fused)
# -----------------------------------------------------------------------------
def conv_bn(x, p, *, k, stride=1, pad=0, relu=False, residual=None):
    """Conv2d (+folded eval BN) on x: [Cin, B, H, W] bf16.

    p["w"]: bf16 [Cout, K_pad] (matmul layout, packed at init),
    p["b"]: f32 [Cout, 1].  1x1 convs are a plain lane-dense matmul (no
    im2col); kxk convs gather taps in XLA (bf16) and use the same matmul.
    """
    w, b = p["w"], p["b"]
    Cout, K_pad = w.shape
    Cin, B, H, W = x.shape
    K = k * k * Cin
    if k == 1 and pad == 0:
        if stride != 1:
            x = x[:, :, ::stride, ::stride]
        Ho, Wo = x.shape[2], x.shape[3]
        col = x.reshape(Cin, B * Ho * Wo)
    else:
        Ho = (H + 2 * pad - k) // stride + 1
        Wo = (W + 2 * pad - k) // stride + 1
        xp = jnp.pad(x, ((0, 0), (0, 0), (pad, pad), (pad, pad)))
        taps = [xp[:, :, i:i + stride * Ho:stride, j:j + stride * Wo:stride]
                for i in range(k) for j in range(k)]
        col = jnp.stack(taps, axis=0).reshape(K, B * Ho * Wo)
    if K_pad != K:                           # K aligned to a multiple of 8
        col = jnp.pad(col, ((0, K_pad - K), (0, 0)))

    res_slab = None
    if residual is not None:
        res_slab = residual.reshape(Cout, B * Ho * Wo)
    out = lane_matmul(w, col, b, relu=relu, residual=res_slab,
                      bias_per_row=True, out_dtype=jnp.bfloat16)
    return out.reshape(Cout, B, Ho, Wo)


# -----------------------------------------------------------------------------
# Parameter construction (deterministic, synthetic; packed for the kernels)
# -----------------------------------------------------------------------------
def _init_conv_bn(key, cout, cin, k):
    k1, k2, k3, k4, k5 = jax.random.split(key, 5)
    fan_in = cin * k * k
    w = jax.random.normal(k1, (cout, cin, k, k), jnp.float32) / math.sqrt(fan_in)
    gamma = jax.random.uniform(k2, (cout,), minval=0.8, maxval=1.2)
    beta = 0.1 * jax.random.normal(k3, (cout,))
    mean = 0.1 * jax.random.normal(k4, (cout,))
    var = jax.random.uniform(k5, (cout,), minval=0.5, maxval=1.5)
    scale = gamma / jnp.sqrt(var + 1e-5)               # fold BN running stats
    w_fold = w * scale[:, None, None, None]
    b_fold = beta - mean * scale
    K = cin * k * k
    K_pad = _round_up(K, 8)
    w2 = jnp.transpose(w_fold, (0, 2, 3, 1)).reshape(cout, K)   # [Cout, k*k*Cin]
    if K_pad != K:
        w2 = jnp.pad(w2, ((0, 0), (0, K_pad - K)))
    return {"w": w2.astype(jnp.bfloat16),
            "b": b_fold.reshape(cout, 1).astype(jnp.float32)}


def _init_bottleneck(key, inplanes, planes, downsample):
    keys = jax.random.split(key, 4)
    p = {
        "conv1": _init_conv_bn(keys[0], planes, inplanes, 1),
        "conv2": _init_conv_bn(keys[1], planes, planes, 3),
        "conv3": _init_conv_bn(keys[2], planes * EXPANSION, planes, 1),
    }
    if downsample:
        p["down"] = _init_conv_bn(keys[3], planes * EXPANSION, inplanes, 1)
    return p


def init_cnn_encoder2(key, dim_embedding, img_hw, base_width=8,
                      layer1_blocks=3, layer2_blocks=8):
    keys = jax.random.split(key, 2 + layer1_blocks + layer2_blocks)
    params = {"stem": _init_conv_bn(keys[0], base_width, 3, 7)}
    inplanes = base_width
    layer1 = []
    for bi in range(layer1_blocks):
        layer1.append(_init_bottleneck(keys[1 + bi], inplanes, base_width,
                                       downsample=(bi == 0)))
        inplanes = base_width * EXPANSION
    params["layer1"] = layer1
    layer2 = []
    for bi in range(layer2_blocks):
        layer2.append(_init_bottleneck(keys[1 + layer1_blocks + bi], inplanes,
                                       base_width * 2, downsample=(bi == 0)))
        inplanes = base_width * 2 * EXPANSION
    params["layer2"] = layer2
    # original: in_features = int((224 / 8) ** 2); here (img_hw / 8) ** 2
    in_features = (img_hw // 8) ** 2
    kw_, kb_ = jax.random.split(keys[-1])
    bound = 1.0 / math.sqrt(in_features)
    wl = jax.random.uniform(kw_, (dim_embedding, in_features),
                            minval=-bound, maxval=bound)
    bl = jax.random.uniform(kb_, (dim_embedding,), minval=-bound, maxval=bound)
    # Pre-pack for lane-dense matmul: Wl^T [HW, E] bf16, bias [1, E] f32.
    params["linear_wt"] = jnp.transpose(wl).astype(jnp.bfloat16)
    params["linear_b"] = bl.reshape(1, dim_embedding).astype(jnp.float32)
    return params


# -----------------------------------------------------------------------------
# Forward pass (mirrors CNNEncoder2.forward)
# -----------------------------------------------------------------------------
def _bottleneck_fwd(x, p, stride):
    out = conv_bn(x, p["conv1"], k=1, relu=True)
    out = conv_bn(out, p["conv2"], k=3, stride=stride, pad=1, relu=True)
    if "down" in p:
        identity = conv_bn(x, p["down"], k=1, stride=stride, relu=False)
    else:
        identity = x
    # residual add + ReLU fused into conv3's matmul epilogue
    return conv_bn(out, p["conv3"], k=1, relu=True, residual=identity)


def cnn_encoder2_forward(params, imgs):
    # NCHW -> channel-major bf16 [C, B, H, W] once at the input; lane-dense after.
    x = jnp.transpose(imgs, (1, 0, 2, 3)).astype(jnp.bfloat16)
    # backbone = conv1 / bn1 / relu / maxpool / layer1 / layer2  (stride-8)
    x = conv_bn(x, params["stem"], k=7, stride=2, pad=3, relu=True)
    x = maxpool_3x3_s2_p1(x)
    for p in params["layer1"]:
        x = _bottleneck_fwd(x, p, stride=1)
    for bi, p in enumerate(params["layer2"]):
        x = _bottleneck_fwd(x, p, stride=2 if bi == 0 else 1)
    C2, B, H, W = x.shape
    # Linear over the flattened spatial dim WITHOUT a big input transpose:
    #   out[C2*B, E] = X[C2*B, HW] @ Wl^T[HW, E] + b   (X is a free reshape)
    x2 = x.reshape(C2 * B, H * W)
    out2 = lane_matmul(x2, params["linear_wt"], params["linear_b"],
                       relu=False, bias_per_row=False, out_dtype=jnp.float32)
    E = out2.shape[1]
    return out2.reshape(C2, B, E).transpose(1, 0, 2)   # [B, C2, dim_embedding]


# -----------------------------------------------------------------------------
if __name__ == "__main__":
    key = jax.random.PRNGKey(0)
    kp, kx = jax.random.split(key)

    dim_embedding = 32
    img_hw = 32                       # small stand-in for 224 (still stride-8)
    params = init_cnn_encoder2(kp, dim_embedding, img_hw)
    imgs = jax.random.normal(kx, (2, 3, img_hw, img_hw), jnp.float32)

    fwd = jax.jit(cnn_encoder2_forward)
    out = jax.block_until_ready(fwd(params, imgs))

    expected_channels = 8 * 2 * EXPANSION                 # layer2 output channels
    assert out.shape == (2, expected_channels, dim_embedding), out.shape
    assert out.dtype == jnp.float32
    assert bool(jnp.all(jnp.isfinite(out)))
    print("KERNEL_OK")
</pallas_src>

<mosaic_0001>
module attributes {stable_mosaic.version = 11 : i64} {
  func.func @_mm_kernel(%arg0: i32, %arg1: i32, %arg2: memref<8x152xbf16, #tpu.memory_space<vmem>>, %arg3: memref<152x512xbf16, #tpu.memory_space<vmem>>, %arg4: memref<8x1xf32, #tpu.memory_space<vmem>>, %arg5: memref<8x512xbf16, #tpu.memory_space<vmem>>) attributes {dimension_semantics = [#tpu.dimension_semantics<parallel>, #tpu.dimension_semantics<parallel>], iteration_bounds = array<i64: 1, 1>, scalar_prefetch = 0 : i64, scratch_operands = 0 : i64, tpu.core_type = #tpu.core_type<tc>, window_params = [{transform_indices = @transform_0, window_bounds = array<i64: 8, 152>}, {transform_indices = @transform_1, window_bounds = array<i64: 152, 512>}, {transform_indices = @transform_2, window_bounds = array<i64: 8, 1>}, {transform_indices = @transform_3, window_bounds = array<i64: 8, 512>}]} {
    %c0 = arith.constant 0 : index
    %c0_0 = arith.constant 0 : index
    %0 = vector.load %arg2[%c0, %c0_0] : memref<8x152xbf16, #tpu.memory_space<vmem>>, vector<8x152xbf16>
    %c0_1 = arith.constant 0 : index
    %c0_2 = arith.constant 0 : index
    %1 = vector.load %arg3[%c0_1, %c0_2] : memref<152x512xbf16, #tpu.memory_space<vmem>>, vector<152x512xbf16>
    %cst = arith.constant dense<0.000000e+00> : vector<8x512xf32>
    %2 = tpu.matmul %0, %1, %cst {dimension_numbers = #tpu.dot_dimension_numbers<[1], [0], [0], [1], [0, 0, 1, 1], [], []>} : vector<8x152xbf16>, vector<152x512xbf16>, vector<8x512xf32> -> vector<8x512xf32>
    %c0_3 = arith.constant 0 : index
    %c0_4 = arith.constant 0 : index
    %3 = vector.load %arg4[%c0_3, %c0_4] : memref<8x1xf32, #tpu.memory_space<vmem>>, vector<8x1xf32>
    %4 = vector.broadcast %3 : vector<8x1xf32> to vector<8x512xf32>
    %5 = arith.addf %2, %4 : vector<8x512xf32>
    %cst_5 = arith.constant 0.000000e+00 : f32
    %6 = vector.broadcast %cst_5 : f32 to vector<8x512xf32>
    %7 = arith.maximumf %5, %6 : vector<8x512xf32>
    %8 = arith.truncf %7 : vector<8x512xf32> to vector<8x512xbf16>
    %c0_6 = arith.constant 0 : index
    %c0_7 = arith.constant 0 : index
    %9 = vector.load %arg5[%c0_6, %c0_7] : memref<8x512xbf16, #tpu.memory_space<vmem>>, vector<8x512xbf16>
    tpu.vector_store %arg5[%c0_6, %c0_7], %8 {strides = array<i32>} : memref<8x512xbf16, #tpu.memory_space<vmem>>, vector<8x512xbf16>,
    return
  }
  func.func @transform_0(%arg0: i32, %arg1: i32) -> (i32, i32) {
    %c0_i32 = arith.constant 0 : i32
    %c0_i32_0 = arith.constant 0 : i32
    return %arg0, %c0_i32 : i32, i32
  }
  func.func @transform_1(%arg0: i32, %arg1: i32) -> (i32, i32) {
    %c0_i32 = arith.constant 0 : i32
    %c0_i32_0 = arith.constant 0 : i32
    return %c0_i32, %arg1 : i32, i32
  }
  func.func @transform_2(%arg0: i32, %arg1: i32) -> (i32, i32) {
    %c0_i32 = arith.constant 0 : i32
    %c0_i32_0 = arith.constant 0 : i32
    return %arg0, %c0_i32 : i32, i32
  }
  func.func @transform_3(%arg0: i32, %arg1: i32) -> (i32, i32) {
    %c0_i32 = arith.constant 0 : i32
    return %arg0, %arg1 : i32, i32
  }
}

module attributes {stable_mosaic.version = 11 : i64} {
  func.func @_maxpool_kernel(%arg0: i32, %arg1: memref<9x8x128xbf16, #tpu.memory_space<vmem>>, %arg2: memref<8x128xbf16, #tpu.memory_space<vmem>>) attributes {dimension_semantics = [#tpu.dimension_semantics<parallel>], iteration_bounds = array<i64: 1>, scalar_prefetch = 0 : i64, scratch_operands = 0 : i64, tpu.core_type = #tpu.core_type<tc>, window_params = [{transform_indices = @transform_0, window_bounds = array<i64: 9, 8, 128>}, {transform_indices = @transform_1, window_bounds = array<i64: 8, 128>}]} {
    %c0 = arith.constant 0 : index
    %c0_0 = arith.constant 0 : index
    %c0_1 = arith.constant 0 : index
    %0 = vector.load %arg1[%c0, %c0_0, %c0_1] : memref<9x8x128xbf16, #tpu.memory_space<vmem>>, vector<1x8x128xbf16>
    %1 = vector.shape_cast %0 : vector<1x8x128xbf16> to vector<8x128xbf16>
    %c1 = arith.constant 1 : index
    %c0_2 = arith.constant 0 : index
    %c0_3 = arith.constant 0 : index
    %2 = vector.load %arg1[%c1, %c0_2, %c0_3] : memref<9x8x128xbf16, #tpu.memory_space<vmem>>, vector<1x8x128xbf16>
    %3 = vector.shape_cast %2 : vector<1x8x128xbf16> to vector<8x128xbf16>
    %4 = arith.maximumf %1, %3 : vector<8x128xbf16>
    %c2 = arith.constant 2 : index
    %c0_4 = arith.constant 0 : index
    %c0_5 = arith.constant 0 : index
    %5 = vector.load %arg1[%c2, %c0_4, %c0_5] : memref<9x8x128xbf16, #tpu.memory_space<vmem>>, vector<1x8x128xbf16>
    %6 = vector.shape_cast %5 : vector<1x8x128xbf16> to vector<8x128xbf16>
    %7 = arith.maximumf %4, %6 : vector<8x128xbf16>
    %c3 = arith.constant 3 : index
    %c0_6 = arith.constant 0 : index
    %c0_7 = arith.constant 0 : index
    %8 = vector.load %arg1[%c3, %c0_6, %c0_7] : memref<9x8x128xbf16, #tpu.memory_space<vmem>>, vector<1x8x128xbf16>
    %9 = vector.shape_cast %8 : vector<1x8x128xbf16> to vector<8x128xbf16>
    %10 = arith.maximumf %7, %9 : vector<8x128xbf16>
    %c4 = arith.constant 4 : index
    %c0_8 = arith.constant 0 : index
    %c0_9 = arith.constant 0 : index
    %11 = vector.load %arg1[%c4, %c0_8, %c0_9] : memref<9x8x128xbf16, #tpu.memory_space<vmem>>, vector<1x8x128xbf16>
    %12 = vector.shape_cast %11 : vector<1x8x128xbf16> to vector<8x128xbf16>
    %13 = arith.maximumf %10, %12 : vector<8x128xbf16>
    %c5 = arith.constant 5 : index
    %c0_10 = arith.constant 0 : index
    %c0_11 = arith.constant 0 : index
    %14 = vector.load %arg1[%c5, %c0_10, %c0_11] : memref<9x8x128xbf16, #tpu.memory_space<vmem>>, vector<1x8x128xbf16>
    %15 = vector.shape_cast %14 : vector<1x8x128xbf16> to vector<8x128xbf16>
    %16 = arith.maximumf %13, %15 : vector<8x128xbf16>
    %c6 = arith.constant 6 : index
    %c0_12 = arith.constant 0 : index
    %c0_13 = arith.constant 0 : index
    %17 = vector.load %arg1[%c6, %c0_12, %c0_13] : memref<9x8x128xbf16, #tpu.memory_space<vmem>>, vector<1x8x128xbf16>
    %18 = vector.shape_cast %17 : vector<1x8x128xbf16> to vector<8x128xbf16>
    %19 = arith.maximumf %16, %18 : vector<8x128xbf16>
    %c7 = arith.constant 7 : index
    %c0_14 = arith.constant 0 : index
    %c0_15 = arith.constant 0 : index
    %20 = vector.load %arg1[%c7, %c0_14, %c0_15] : memref<9x8x128xbf16, #tpu.memory_space<vmem>>, vector<1x8x128xbf16>
    %21 = vector.shape_cast %20 : vector<1x8x128xbf16> to vector<8x128xbf16>
    %22 = arith.maximumf %19, %21 : vector<8x128xbf16>
    %c8 = arith.constant 8 : index
    %c0_16 = arith.constant 0 : index
    %c0_17 = arith.constant 0 : index
    %23 = vector.load %arg1[%c8, %c0_16, %c0_17] : memref<9x8x128xbf16, #tpu.memory_space<vmem>>, vector<1x8x128xbf16>
    %24 = vector.shape_cast %23 : vector<1x8x128xbf16> to vector<8x128xbf16>
    %25 = arith.maximumf %22, %24 : vector<8x128xbf16>
    %c0_18 = arith.constant 0 : index
    %c0_19 = arith.constant 0 : index
    %26 = vector.load %arg2[%c0_18, %c0_19] : memref<8x128xbf16, #tpu.memory_space<vmem>>, vector<8x128xbf16>
    tpu.vector_store %arg2[%c0_18, %c0_19], %25 {strides = array<i32>} : memref<8x128xbf16, #tpu.memory_space<vmem>>, vector<8x128xbf16>,
    return
  }
  func.func @transform_0(%arg0: i32) -> (i32, i32, i32) {
    %c0_i32 = arith.constant 0 : i32
    %c0_i32_0 = arith.constant 0 : i32
    %c0_i32_1 = arith.constant 0 : i32
    return %c0_i32, %c0_i32_0, %arg0 : i32, i32, i32
  }
  func.func @transform_1(%arg0: i32) -> (i32, i32) {
    %c0_i32 = arith.constant 0 : i32
    %c0_i32_0 = arith.constant 0 : i32
    return %c0_i32, %arg0 : i32, i32
  }
}

module attributes {stable_mosaic.version = 11 : i64} {
  func.func @_mm_kernel(%arg0: i32, %arg1: i32, %arg2: memref<8x8xbf16, #tpu.memory_space<vmem>>, %arg3: memref<8x128xbf16, #tpu.memory_space<vmem>>, %arg4: memref<8x1xf32, #tpu.memory_space<vmem>>, %arg5: memref<8x128xbf16, #tpu.memory_space<vmem>>) attributes {dimension_semantics = [#tpu.dimension_semantics<parallel>, #tpu.dimension_semantics<parallel>], iteration_bounds = array<i64: 1, 1>, scalar_prefetch = 0 : i64, scratch_operands = 0 : i64, tpu.core_type = #tpu.core_type<tc>, window_params = [{transform_indices = @transform_0, window_bounds = array<i64: 8, 8>}, {transform_indices = @transform_1, window_bounds = array<i64: 8, 128>}, {transform_indices = @transform_2, window_bounds = array<i64: 8, 1>}, {transform_indices = @transform_3, window_bounds = array<i64: 8, 128>}]} {
    %c0 = arith.constant 0 : index
    %c0_0 = arith.constant 0 : index
    %0 = vector.load %arg2[%c0, %c0_0] : memref<8x8xbf16, #tpu.memory_space<vmem>>, vector<8x8xbf16>
    %c0_1 = arith.constant 0 : index
    %c0_2 = arith.constant 0 : index
    %1 = vector.load %arg3[%c0_1, %c0_2] : memref<8x128xbf16, #tpu.memory_space<vmem>>, vector<8x128xbf16>
    %cst = arith.constant dense<0.000000e+00> : vector<8x128xf32>
    %2 = tpu.matmul %0, %1, %cst {dimension_numbers = #tpu.dot_dimension_numbers<[1], [0], [0], [1], [0, 0, 1, 1], [], []>} : vector<8x8xbf16>, vector<8x128xbf16>, vector<8x128xf32> -> vector<8x128xf32>
    %c0_3 = arith.constant 0 : index
    %c0_4 = arith.constant 0 : index
    %3 = vector.load %arg4[%c0_3, %c0_4] : memref<8x1xf32, #tpu.memory_space<vmem>>, vector<8x1xf32>
    %4 = vector.broadcast %3 : vector<8x1xf32> to vector<8x128xf32>
    %5 = arith.addf %2, %4 : vector<8x128xf32>
    %cst_5 = arith.constant 0.000000e+00 : f32
    %6 = vector.broadcast %cst_5 : f32 to vector<8x128xf32>
    %7 = arith.maximumf %5, %6 : vector<8x128xf32>
    %8 = arith.truncf %7 : vector<8x128xf32> to vector<8x128xbf16>
    %c0_6 = arith.constant 0 : index
    %c0_7 = arith.constant 0 : index
    %9 = vector.load %arg5[%c0_6, %c0_7] : memref<8x128xbf16, #tpu.memory_space<vmem>>, vector<8x128xbf16>
    tpu.vector_store %arg5[%c0_6, %c0_7], %8 {strides = array<i32>} : memref<8x128xbf16, #tpu.memory_space<vmem>>, vector<8x128xbf16>,
    return
  }
  func.func @transform_0(%arg0: i32, %arg1: i32) -> (i32, i32) {
    %c0_i32 = arith.constant 0 : i32
    %c0_i32_0 = arith.constant 0 : i32
    return %arg0, %c0_i32 : i32, i32
  }
  func.func @transform_1(%arg0: i32, %arg1: i32) -> (i32, i32) {
    %c0_i32 = arith.constant 0 : i32
    %c0_i32_0 = arith.constant 0 : i32
    return %c0_i32, %arg1 : i32, i32
  }
  func.func @transform_2(%arg0: i32, %arg1: i32) -> (i32, i32) {
    %c0_i32 = arith.constant 0 : i32
    %c0_i32_0 = arith.constant 0 : i32
    return %arg0, %c0_i32 : i32, i32
  }
  func.func @transform_3(%arg0: i32, %arg1: i32) -> (i32, i32) {
    %c0_i32 = arith.constant 0 : i32
    return %arg0, %arg1 : i32, i32
  }
}

module attributes {stable_mosaic.version = 11 : i64} {
  func.func @_mm_kernel(%arg0: i32, %arg1: i32, %arg2: memref<8x72xbf16, #tpu.memory_space<vmem>>, %arg3: memref<72x128xbf16, #tpu.memory_space<vmem>>, %arg4: memref<8x1xf32, #tpu.memory_space<vmem>>, %arg5: memref<8x128xbf16, #tpu.memory_space<vmem>>) attributes {dimension_semantics = [#tpu.dimension_semantics<parallel>, #tpu.dimension_semantics<parallel>], iteration_bounds = array<i64: 1, 1>, scalar_prefetch = 0 : i64, scratch_operands = 0 : i64, tpu.core_type = #tpu.core_type<tc>, window_params = [{transform_indices = @transform_0, window_bounds = array<i64: 8, 72>}, {transform_indices = @transform_1, window_bounds = array<i64: 72, 128>}, {transform_indices = @transform_2, window_bounds = array<i64: 8, 1>}, {transform_indices = @transform_3, window_bounds = array<i64: 8, 128>}]} {
    %c0 = arith.constant 0 : index
    %c0_0 = arith.constant 0 : index
    %0 = vector.load %arg2[%c0, %c0_0] : memref<8x72xbf16, #tpu.memory_space<vmem>>, vector<8x72xbf16>
    %c0_1 = arith.constant 0 : index
    %c0_2 = arith.constant 0 : index
    %1 = vector.load %arg3[%c0_1, %c0_2] : memref<72x128xbf16, #tpu.memory_space<vmem>>, vector<72x128xbf16>
    %cst = arith.constant dense<0.000000e+00> : vector<8x128xf32>
    %2 = tpu.matmul %0, %1, %cst {dimension_numbers = #tpu.dot_dimension_numbers<[1], [0], [0], [1], [0, 0, 1, 1], [], []>} : vector<8x72xbf16>, vector<72x128xbf16>, vector<8x128xf32> -> vector<8x128xf32>
    %c0_3 = arith.constant 0 : index
    %c0_4 = arith.constant 0 : index
    %3 = vector.load %arg4[%c0_3, %c0_4] : memref<8x1xf32, #tpu.memory_space<vmem>>, vector<8x1xf32>
    %4 = vector.broadcast %3 : vector<8x1xf32> to vector<8x128xf32>
    %5 = arith.addf %2, %4 : vector<8x128xf32>
    %cst_5 = arith.constant 0.000000e+00 : f32
    %6 = vector.broadcast %cst_5 : f32 to vector<8x128xf32>
    %7 = arith.maximumf %5, %6 : vector<8x128xf32>
    %8 = arith.truncf %7 : vector<8x128xf32> to vector<8x128xbf16>
    %c0_6 = arith.constant 0 : index
    %c0_7 = arith.constant 0 : index
    %9 = vector.load %arg5[%c0_6, %c0_7] : memref<8x128xbf16, #tpu.memory_space<vmem>>, vector<8x128xbf16>
    tpu.vector_store %arg5[%c0_6, %c0_7], %8 {strides = array<i32>} : memref<8x128xbf16, #tpu.memory_space<vmem>>, vector<8x128xbf16>,
    return
  }
  func.func @transform_0(%arg0: i32, %arg1: i32) -> (i32, i32) {
    %c0_i32 = arith.constant 0 : i32
    %c0_i32_0 = arith.constant 0 : i32
    return %arg0, %c0_i32 : i32, i32
  }
  func.func @transform_1(%arg0: i32, %arg1: i32) -> (i32, i32) {
    %c0_i32 = arith.constant 0 : i32
    %c0_i32_0 = arith.constant 0 : i32
    return %c0_i32, %arg1 : i32, i32
  }
  func.func @transform_2(%arg0: i32, %arg1: i32) -> (i32, i32) {
    %c0_i32 = arith.constant 0 : i32
    %c0_i32_0 = arith.constant 0 : i32
    return %arg0, %c0_i32 : i32, i32
  }
  func.func @transform_3(%arg0: i32, %arg1: i32) -> (i32, i32) {
    %c0_i32 = arith.constant 0 : i32
    return %arg0, %arg1 : i32, i32
  }
}

module attributes {stable_mosaic.version = 11 : i64} {
  func.func @_mm_kernel(%arg0: i32, %arg1: i32, %arg2: memref<32x8xbf16, #tpu.memory_space<vmem>>, %arg3: memref<8x128xbf16, #tpu.memory_space<vmem>>, %arg4: memref<32x1xf32, #tpu.memory_space<vmem>>, %arg5: memref<32x128xbf16, #tpu.memory_space<vmem>>) attributes {dimension_semantics = [#tpu.dimension_semantics<parallel>, #tpu.dimension_semantics<parallel>], iteration_bounds = array<i64: 1, 1>, scalar_prefetch = 0 : i64, scratch_operands = 0 : i64, tpu.core_type = #tpu.core_type<tc>, window_params = [{transform_indices = @transform_0, window_bounds = array<i64: 32, 8>}, {transform_indices = @transform_1, window_bounds = array<i64: 8, 128>}, {transform_indices = @transform_2, window_bounds = array<i64: 32, 1>}, {transform_indices = @transform_3, window_bounds = array<i64: 32, 128>}]} {
    %c0 = arith.constant 0 : index
    %c0_0 = arith.constant 0 : index
    %0 = vector.load %arg2[%c0, %c0_0] : memref<32x8xbf16, #tpu.memory_space<vmem>>, vector<32x8xbf16>
    %c0_1 = arith.constant 0 : index
    %c0_2 = arith.constant 0 : index
    %1 = vector.load %arg3[%c0_1, %c0_2] : memref<8x128xbf16, #tpu.memory_space<vmem>>, vector<8x128xbf16>
    %cst = arith.constant dense<0.000000e+00> : vector<32x128xf32>
    %2 = tpu.matmul %0, %1, %cst {dimension_numbers = #tpu.dot_dimension_numbers<[1], [0], [0], [1], [0, 0, 1, 1], [], []>} : vector<32x8xbf16>, vector<8x128xbf16>, vector<32x128xf32> -> vector<32x128xf32>
    %c0_3 = arith.constant 0 : index
    %c0_4 = arith.constant 0 : index
    %3 = vector.load %arg4[%c0_3, %c0_4] : memref<32x1xf32, #tpu.memory_space<vmem>>, vector<32x1xf32>
    %4 = vector.broadcast %3 : vector<32x1xf32> to vector<32x128xf32>
    %5 = arith.addf %2, %4 : vector<32x128xf32>
    %6 = arith.truncf %5 : vector<32x128xf32> to vector<32x128xbf16>
    %c0_5 = arith.constant 0 : index
    %c0_6 = arith.constant 0 : index
    %7 = vector.load %arg5[%c0_5, %c0_6] : memref<32x128xbf16, #tpu.memory_space<vmem>>, vector<32x128xbf16>
    tpu.vector_store %arg5[%c0_5, %c0_6], %6 {strides = array<i32>} : memref<32x128xbf16, #tpu.memory_space<vmem>>, vector<32x128xbf16>,
    return
  }
  func.func @transform_0(%arg0: i32, %arg1: i32) -> (i32, i32) {
    %c0_i32 = arith.constant 0 : i32
    %c0_i32_0 = arith.constant 0 : i32
    return %arg0, %c0_i32 : i32, i32
  }
  func.func @transform_1(%arg0: i32, %arg1: i32) -> (i32, i32) {
    %c0_i32 = arith.constant 0 : i32
    %c0_i32_0 = arith.constant 0 : i32
    return %c0_i32, %arg1 : i32, i32
  }
  func.func @transform_2(%arg0: i32, %arg1: i32) -> (i32, i32) {
    %c0_i32 = arith.constant 0 : i32
    %c0_i32_0 = arith.constant 0 : i32
    return %arg0, %c0_i32 : i32, i32
  }
  func.func @transform_3(%arg0: i32, %arg1: i32) -> (i32, i32) {
    %c0_i32 = arith.constant 0 : i32
    return %arg0, %arg1 : i32, i32
  }
}

module attributes {stable_mosaic.version = 11 : i64} {
  func.func @_mm_kernel(%arg0: i32, %arg1: i32, %arg2: memref<32x8xbf16, #tpu.memory_space<vmem>>, %arg3: memref<8x128xbf16, #tpu.memory_space<vmem>>, %arg4: memref<32x1xf32, #tpu.memory_space<vmem>>, %arg5: memref<32x128xbf16, #tpu.memory_space<vmem>>, %arg6: memref<32x128xbf16, #tpu.memory_space<vmem>>) attributes {dimension_semantics = [#tpu.dimension_semantics<parallel>, #tpu.dimension_semantics<parallel>], iteration_bounds = array<i64: 1, 1>, scalar_prefetch = 0 : i64, scratch_operands = 0 : i64, tpu.core_type = #tpu.core_type<tc>, window_params = [{transform_indices = @transform_0, window_bounds = array<i64: 32, 8>}, {transform_indices = @transform_1, window_bounds = array<i64: 8, 128>}, {transform_indices = @transform_2, window_bounds = array<i64: 32, 1>}, {transform_indices = @transform_3, window_bounds = array<i64: 32, 128>}, {transform_indices = @transform_4, window_bounds = array<i64: 32, 128>}]} {
    %c0 = arith.constant 0 : index
    %c0_0 = arith.constant 0 : index
    %0 = vector.load %arg2[%c0, %c0_0] : memref<32x8xbf16, #tpu.memory_space<vmem>>, vector<32x8xbf16>
    %c0_1 = arith.constant 0 : index
    %c0_2 = arith.constant 0 : index
    %1 = vector.load %arg3[%c0_1, %c0_2] : memref<8x128xbf16, #tpu.memory_space<vmem>>, vector<8x128xbf16>
    %cst = arith.constant dense<0.000000e+00> : vector<32x128xf32>
    %2 = tpu.matmul %0, %1, %cst {dimension_numbers = #tpu.dot_dimension_numbers<[1], [0], [0], [1], [0, 0, 1, 1], [], []>} : vector<32x8xbf16>, vector<8x128xbf16>, vector<32x128xf32> -> vector<32x128xf32>
    %c0_3 = arith.constant 0 : index
    %c0_4 = arith.constant 0 : index
    %3 = vector.load %arg4[%c0_3, %c0_4] : memref<32x1xf32, #tpu.memory_space<vmem>>, vector<32x1xf32>
    %4 = vector.broadcast %3 : vector<32x1xf32> to vector<32x128xf32>
    %5 = arith.addf %2, %4 : vector<32x128xf32>
    %c0_5 = arith.constant 0 : index
    %c0_6 = arith.constant 0 : index
    %6 = vector.load %arg5[%c0_5, %c0_6] : memref<32x128xbf16, #tpu.memory_space<vmem>>, vector<32x128xbf16>
    %7 = arith.extf %6 : vector<32x128xbf16> to vector<32x128xf32>
    %8 = arith.addf %5, %7 : vector<32x128xf32>
    %cst_7 = arith.constant 0.000000e+00 : f32
    %9 = vector.broadcast %cst_7 : f32 to vector<32x128xf32>
    %10 = arith.maximumf %8, %9 : vector<32x128xf32>
    %11 = arith.truncf %10 : vector<32x128xf32> to vector<32x128xbf16>
    %c0_8 = arith.constant 0 : index
    %c0_9 = arith.constant 0 : index
    %12 = vector.load %arg6[%c0_8, %c0_9] : memref<32x128xbf16, #tpu.memory_space<vmem>>, vector<32x128xbf16>
    tpu.vector_store %arg6[%c0_8, %c0_9], %11 {strides = array<i32>} : memref<32x128xbf16, #tpu.memory_space<vmem>>, vector<32x128xbf16>,
    return
  }
  func.func @transform_0(%arg0: i32, %arg1: i32) -> (i32, i32) {
    %c0_i32 = arith.constant 0 : i32
    %c0_i32_0 = arith.constant 0 : i32
    return %arg0, %c0_i32 : i32, i32
  }
  func.func @transform_1(%arg0: i32, %arg1: i32) -> (i32, i32) {
    %c0_i32 = arith.constant 0 : i32
    %c0_i32_0 = arith.constant 0 : i32
    return %c0_i32, %arg1 : i32, i32
  }
  func.func @transform_2(%arg0: i32, %arg1: i32) -> (i32, i32) {
    %c0_i32 = arith.constant 0 : i32
    %c0_i32_0 = arith.constant 0 : i32
    return %arg0, %c0_i32 : i32, i32
  }
  func.func @transform_3(%arg0: i32, %arg1: i32) -> (i32, i32) {
    %c0_i32 = arith.constant 0 : i32
    return %arg0, %arg1 : i32, i32
  }
  func.func @transform_4(%arg0: i32, %arg1: i32) -> (i32, i32) {
    %c0_i32 = arith.constant 0 : i32
    return %arg0, %arg1 : i32, i32
  }
}

module attributes {stable_mosaic.version = 11 : i64} {
  func.func @_mm_kernel(%arg0: i32, %arg1: i32, %arg2: memref<8x32xbf16, #tpu.memory_space<vmem>>, %arg3: memref<32x128xbf16, #tpu.memory_space<vmem>>, %arg4: memref<8x1xf32, #tpu.memory_space<vmem>>, %arg5: memref<8x128xbf16, #tpu.memory_space<vmem>>) attributes {dimension_semantics = [#tpu.dimension_semantics<parallel>, #tpu.dimension_semantics<parallel>], iteration_bounds = array<i64: 1, 1>, scalar_prefetch = 0 : i64, scratch_operands = 0 : i64, tpu.core_type = #tpu.core_type<tc>, window_params = [{transform_indices = @transform_0, window_bounds = array<i64: 8, 32>}, {transform_indices = @transform_1, window_bounds = array<i64: 32, 128>}, {transform_indices = @transform_2, window_bounds = array<i64: 8, 1>}, {transform_indices = @transform_3, window_bounds = array<i64: 8, 128>}]} {
    %c0 = arith.constant 0 : index
    %c0_0 = arith.constant 0 : index
    %0 = vector.load %arg2[%c0, %c0_0] : memref<8x32xbf16, #tpu.memory_space<vmem>>, vector<8x32xbf16>
    %c0_1 = arith.constant 0 : index
    %c0_2 = arith.constant 0 : index
    %1 = vector.load %arg3[%c0_1, %c0_2] : memref<32x128xbf16, #tpu.memory_space<vmem>>, vector<32x128xbf16>
    %cst = arith.constant dense<0.000000e+00> : vector<8x128xf32>
    %2 = tpu.matmul %0, %1, %cst {dimension_numbers = #tpu.dot_dimension_numbers<[1], [0], [0], [1], [0, 0, 1, 1], [], []>} : vector<8x32xbf16>, vector<32x128xbf16>, vector<8x128xf32> -> vector<8x128xf32>
    %c0_3 = arith.constant 0 : index
    %c0_4 = arith.constant 0 : index
    %3 = vector.load %arg4[%c0_3, %c0_4] : memref<8x1xf32, #tpu.memory_space<vmem>>, vector<8x1xf32>
    %4 = vector.broadcast %3 : vector<8x1xf32> to vector<8x128xf32>
    %5 = arith.addf %2, %4 : vector<8x128xf32>
    %cst_5 = arith.constant 0.000000e+00 : f32
    %6 = vector.broadcast %cst_5 : f32 to vector<8x128xf32>
    %7 = arith.maximumf %5, %6 : vector<8x128xf32>
    %8 = arith.truncf %7 : vector<8x128xf32> to vector<8x128xbf16>
    %c0_6 = arith.constant 0 : index
    %c0_7 = arith.constant 0 : index
    %9 = vector.load %arg5[%c0_6, %c0_7] : memref<8x128xbf16, #tpu.memory_space<vmem>>, vector<8x128xbf16>
    tpu.vector_store %arg5[%c0_6, %c0_7], %8 {strides = array<i32>} : memref<8x128xbf16, #tpu.memory_space<vmem>>, vector<8x128xbf16>,
    return
  }
  func.func @transform_0(%arg0: i32, %arg1: i32) -> (i32, i32) {
    %c0_i32 = arith.constant 0 : i32
    %c0_i32_0 = arith.constant 0 : i32
    return %arg0, %c0_i32 : i32, i32
  }
  func.func @transform_1(%arg0: i32, %arg1: i32) -> (i32, i32) {
    %c0_i32 = arith.constant 0 : i32
    %c0_i32_0 = arith.constant 0 : i32
    return %c0_i32, %arg1 : i32, i32
  }
  func.func @transform_2(%arg0: i32, %arg1: i32) -> (i32, i32) {
    %c0_i32 = arith.constant 0 : i32
    %c0_i32_0 = arith.constant 0 : i32
    return %arg0, %c0_i32 : i32, i32
  }
  func.func @transform_3(%arg0: i32, %arg1: i32) -> (i32, i32) {
    %c0_i32 = arith.constant 0 : i32
    return %arg0, %arg1 : i32, i32
  }
}

module attributes {stable_mosaic.version = 11 : i64} {
  func.func @_mm_kernel(%arg0: i32, %arg1: i32, %arg2: memref<16x32xbf16, #tpu.memory_space<vmem>>, %arg3: memref<32x128xbf16, #tpu.memory_space<vmem>>, %arg4: memref<16x1xf32, #tpu.memory_space<vmem>>, %arg5: memref<16x128xbf16, #tpu.memory_space<vmem>>) attributes {dimension_semantics = [#tpu.dimension_semantics<parallel>, #tpu.dimension_semantics<parallel>], iteration_bounds = array<i64: 1, 1>, scalar_prefetch = 0 : i64, scratch_operands = 0 : i64, tpu.core_type = #tpu.core_type<tc>, window_params = [{transform_indices = @transform_0, window_bounds = array<i64: 16, 32>}, {transform_indices = @transform_1, window_bounds = array<i64: 32, 128>}, {transform_indices = @transform_2, window_bounds = array<i64: 16, 1>}, {transform_indices = @transform_3, window_bounds = array<i64: 16, 128>}]} {
    %c0 = arith.constant 0 : index
    %c0_0 = arith.constant 0 : index
    %0 = vector.load %arg2[%c0, %c0_0] : memref<16x32xbf16, #tpu.memory_space<vmem>>, vector<16x32xbf16>
    %c0_1 = arith.constant 0 : index
    %c0_2 = arith.constant 0 : index
    %1 = vector.load %arg3[%c0_1, %c0_2] : memref<32x128xbf16, #tpu.memory_space<vmem>>, vector<32x128xbf16>
    %cst = arith.constant dense<0.000000e+00> : vector<16x128xf32>
    %2 = tpu.matmul %0, %1, %cst {dimension_numbers = #tpu.dot_dimension_numbers<[1], [0], [0], [1], [0, 0, 1, 1], [], []>} : vector<16x32xbf16>, vector<32x128xbf16>, vector<16x128xf32> -> vector<16x128xf32>
    %c0_3 = arith.constant 0 : index
    %c0_4 = arith.constant 0 : index
    %3 = vector.load %arg4[%c0_3, %c0_4] : memref<16x1xf32, #tpu.memory_space<vmem>>, vector<16x1xf32>
    %4 = vector.broadcast %3 : vector<16x1xf32> to vector<16x128xf32>
    %5 = arith.addf %2, %4 : vector<16x128xf32>
    %cst_5 = arith.constant 0.000000e+00 : f32
    %6 = vector.broadcast %cst_5 : f32 to vector<16x128xf32>
    %7 = arith.maximumf %5, %6 : vector<16x128xf32>
    %8 = arith.truncf %7 : vector<16x128xf32> to vector<16x128xbf16>
    %c0_6 = arith.constant 0 : index
    %c0_7 = arith.constant 0 : index
    %9 = vector.load %arg5[%c0_6, %c0_7] : memref<16x128xbf16, #tpu.memory_space<vmem>>, vector<16x128xbf16>
    tpu.vector_store %arg5[%c0_6, %c0_7], %8 {strides = array<i32>} : memref<16x128xbf16, #tpu.memory_space<vmem>>, vector<16x128xbf16>,
    return
  }
  func.func @transform_0(%arg0: i32, %arg1: i32) -> (i32, i32) {
    %c0_i32 = arith.constant 0 : i32
    %c0_i32_0 = arith.constant 0 : i32
    return %arg0, %c0_i32 : i32, i32
  }
  func.func @transform_1(%arg0: i32, %arg1: i32) -> (i32, i32) {
    %c0_i32 = arith.constant 0 : i32
    %c0_i32_0 = arith.constant 0 : i32
    return %c0_i32, %arg1 : i32, i32
  }
  func.func @transform_2(%arg0: i32, %arg1: i32) -> (i32, i32) {
    %c0_i32 = arith.constant 0 : i32
    %c0_i32_0 = arith.constant 0 : i32
    return %arg0, %c0_i32 : i32, i32
  }
  func.func @transform_3(%arg0: i32, %arg1: i32) -> (i32, i32) {
    %c0_i32 = arith.constant 0 : i32
    return %arg0, %arg1 : i32, i32
  }
}

module attributes {stable_mosaic.version = 11 : i64} {
  func.func @_mm_kernel(%arg0: i32, %arg1: i32, %arg2: memref<16x144xbf16, #tpu.memory_space<vmem>>, %arg3: memref<144x128xbf16, #tpu.memory_space<vmem>>, %arg4: memref<16x1xf32, #tpu.memory_space<vmem>>, %arg5: memref<16x128xbf16, #tpu.memory_space<vmem>>) attributes {dimension_semantics = [#tpu.dimension_semantics<parallel>, #tpu.dimension_semantics<parallel>], iteration_bounds = array<i64: 1, 1>, scalar_prefetch = 0 : i64, scratch_operands = 0 : i64, tpu.core_type = #tpu.core_type<tc>, window_params = [{transform_indices = @transform_0, window_bounds = array<i64: 16, 144>}, {transform_indices = @transform_1, window_bounds = array<i64: 144, 128>}, {transform_indices = @transform_2, window_bounds = array<i64: 16, 1>}, {transform_indices = @transform_3, window_bounds = array<i64: 16, 128>}]} {
    %c0 = arith.constant 0 : index
    %c0_0 = arith.constant 0 : index
    %0 = vector.load %arg2[%c0, %c0_0] : memref<16x144xbf16, #tpu.memory_space<vmem>>, vector<16x144xbf16>
    %c0_1 = arith.constant 0 : index
    %c0_2 = arith.constant 0 : index
    %1 = vector.load %arg3[%c0_1, %c0_2] : memref<144x128xbf16, #tpu.memory_space<vmem>>, vector<144x128xbf16>
    %cst = arith.constant dense<0.000000e+00> : vector<16x128xf32>
    %2 = tpu.matmul %0, %1, %cst {dimension_numbers = #tpu.dot_dimension_numbers<[1], [0], [0], [1], [0, 0, 1, 1], [], []>} : vector<16x144xbf16>, vector<144x128xbf16>, vector<16x128xf32> -> vector<16x128xf32>
    %c0_3 = arith.constant 0 : index
    %c0_4 = arith.constant 0 : index
    %3 = vector.load %arg4[%c0_3, %c0_4] : memref<16x1xf32, #tpu.memory_space<vmem>>, vector<16x1xf32>
    %4 = vector.broadcast %3 : vector<16x1xf32> to vector<16x128xf32>
    %5 = arith.addf %2, %4 : vector<16x128xf32>
    %cst_5 = arith.constant 0.000000e+00 : f32
    %6 = vector.broadcast %cst_5 : f32 to vector<16x128xf32>
    %7 = arith.maximumf %5, %6 : vector<16x128xf32>
    %8 = arith.truncf %7 : vector<16x128xf32> to vector<16x128xbf16>
    %c0_6 = arith.constant 0 : index
    %c0_7 = arith.constant 0 : index
    %9 = vector.load %arg5[%c0_6, %c0_7] : memref<16x128xbf16, #tpu.memory_space<vmem>>, vector<16x128xbf16>
    tpu.vector_store %arg5[%c0_6, %c0_7], %8 {strides = array<i32>} : memref<16x128xbf16, #tpu.memory_space<vmem>>, vector<16x128xbf16>,
    return
  }
  func.func @transform_0(%arg0: i32, %arg1: i32) -> (i32, i32) {
    %c0_i32 = arith.constant 0 : i32
    %c0_i32_0 = arith.constant 0 : i32
    return %arg0, %c0_i32 : i32, i32
  }
  func.func @transform_1(%arg0: i32, %arg1: i32) -> (i32, i32) {
    %c0_i32 = arith.constant 0 : i32
    %c0_i32_0 = arith.constant 0 : i32
    return %c0_i32, %arg1 : i32, i32
  }
  func.func @transform_2(%arg0: i32, %arg1: i32) -> (i32, i32) {
    %c0_i32 = arith.constant 0 : i32
    %c0_i32_0 = arith.constant 0 : i32
    return %arg0, %c0_i32 : i32, i32
  }
  func.func @transform_3(%arg0: i32, %arg1: i32) -> (i32, i32) {
    %c0_i32 = arith.constant 0 : i32
    return %arg0, %arg1 : i32, i32
  }
}

module attributes {stable_mosaic.version = 11 : i64} {
  func.func @_mm_kernel(%arg0: i32, %arg1: i32, %arg2: memref<64x32xbf16, #tpu.memory_space<vmem>>, %arg3: memref<32x128xbf16, #tpu.memory_space<vmem>>, %arg4: memref<64x1xf32, #tpu.memory_space<vmem>>, %arg5: memref<64x128xbf16, #tpu.memory_space<vmem>>) attributes {dimension_semantics = [#tpu.dimension_semantics<parallel>, #tpu.dimension_semantics<parallel>], iteration_bounds = array<i64: 1, 1>, scalar_prefetch = 0 : i64, scratch_operands = 0 : i64, tpu.core_type = #tpu.core_type<tc>, window_params = [{transform_indices = @transform_0, window_bounds = array<i64: 64, 32>}, {transform_indices = @transform_1, window_bounds = array<i64: 32, 128>}, {transform_indices = @transform_2, window_bounds = array<i64: 64, 1>}, {transform_indices = @transform_3, window_bounds = array<i64: 64, 128>}]} {
    %c0 = arith.constant 0 : index
    %c0_0 = arith.constant 0 : index
    %0 = vector.load %arg2[%c0, %c0_0] : memref<64x32xbf16, #tpu.memory_space<vmem>>, vector<64x32xbf16>
    %c0_1 = arith.constant 0 : index
    %c0_2 = arith.constant 0 : index
    %1 = vector.load %arg3[%c0_1, %c0_2] : memref<32x128xbf16, #tpu.memory_space<vmem>>, vector<32x128xbf16>
    %cst = arith.constant dense<0.000000e+00> : vector<64x128xf32>
    %2 = tpu.matmul %0, %1, %cst {dimension_numbers = #tpu.dot_dimension_numbers<[1], [0], [0], [1], [0, 0, 1, 1], [], []>} : vector<64x32xbf16>, vector<32x128xbf16>, vector<64x128xf32> -> vector<64x128xf32>
    %c0_3 = arith.constant 0 : index
    %c0_4 = arith.constant 0 : index
    %3 = vector.load %arg4[%c0_3, %c0_4] : memref<64x1xf32, #tpu.memory_space<vmem>>, vector<64x1xf32>
    %4 = vector.broadcast %3 : vector<64x1xf32> to vector<64x128xf32>
    %5 = arith.addf %2, %4 : vector<64x128xf32>
    %6 = arith.truncf %5 : vector<64x128xf32> to vector<64x128xbf16>
    %c0_5 = arith.constant 0 : index
    %c0_6 = arith.constant 0 : index
    %7 = vector.load %arg5[%c0_5, %c0_6] : memref<64x128xbf16, #tpu.memory_space<vmem>>, vector<64x128xbf16>
    tpu.vector_store %arg5[%c0_5, %c0_6], %6 {strides = array<i32>} : memref<64x128xbf16, #tpu.memory_space<vmem>>, vector<64x128xbf16>,
    return
  }
  func.func @transform_0(%arg0: i32, %arg1: i32) -> (i32, i32) {
    %c0_i32 = arith.constant 0 : i32
    %c0_i32_0 = arith.constant 0 : i32
    return %arg0, %c0_i32 : i32, i32
  }
  func.func @transform_1(%arg0: i32, %arg1: i32) -> (i32, i32) {
    %c0_i32 = arith.constant 0 : i32
    %c0_i32_0 = arith.constant 0 : i32
    return %c0_i32, %arg1 : i32, i32
  }
  func.func @transform_2(%arg0: i32, %arg1: i32) -> (i32, i32) {
    %c0_i32 = arith.constant 0 : i32
    %c0_i32_0 = arith.constant 0 : i32
    return %arg0, %c0_i32 : i32, i32
  }
  func.func @transform_3(%arg0: i32, %arg1: i32) -> (i32, i32) {
    %c0_i32 = arith.constant 0 : i32
    return %arg0, %arg1 : i32, i32
  }
}

module attributes {stable_mosaic.version = 11 : i64} {
  func.func @_mm_kernel(%arg0: i32, %arg1: i32, %arg2: memref<16x64xbf16, #tpu.memory_space<vmem>>, %arg3: memref<64x128xbf16, #tpu.memory_space<vmem>>, %arg4: memref<16x1xf32, #tpu.memory_space<vmem>>, %arg5: memref<16x128xbf16, #tpu.memory_space<vmem>>) attributes {dimension_semantics = [#tpu.dimension_semantics<parallel>, #tpu.dimension_semantics<parallel>], iteration_bounds = array<i64: 1, 1>, scalar_prefetch = 0 : i64, scratch_operands = 0 : i64, tpu.core_type = #tpu.core_type<tc>, window_params = [{transform_indices = @transform_0, window_bounds = array<i64: 16, 64>}, {transform_indices = @transform_1, window_bounds = array<i64: 64, 128>}, {transform_indices = @transform_2, window_bounds = array<i64: 16, 1>}, {transform_indices = @transform_3, window_bounds = array<i64: 16, 128>}]} {
    %c0 = arith.constant 0 : index
    %c0_0 = arith.constant 0 : index
    %0 = vector.load %arg2[%c0, %c0_0] : memref<16x64xbf16, #tpu.memory_space<vmem>>, vector<16x64xbf16>
    %c0_1 = arith.constant 0 : index
    %c0_2 = arith.constant 0 : index
    %1 = vector.load %arg3[%c0_1, %c0_2] : memref<64x128xbf16, #tpu.memory_space<vmem>>, vector<64x128xbf16>
    %cst = arith.constant dense<0.000000e+00> : vector<16x128xf32>
    %2 = tpu.matmul %0, %1, %cst {dimension_numbers = #tpu.dot_dimension_numbers<[1], [0], [0], [1], [0, 0, 1, 1], [], []>} : vector<16x64xbf16>, vector<64x128xbf16>, vector<16x128xf32> -> vector<16x128xf32>
    %c0_3 = arith.constant 0 : index
    %c0_4 = arith.constant 0 : index
    %3 = vector.load %arg4[%c0_3, %c0_4] : memref<16x1xf32, #tpu.memory_space<vmem>>, vector<16x1xf32>
    %4 = vector.broadcast %3 : vector<16x1xf32> to vector<16x128xf32>
    %5 = arith.addf %2, %4 : vector<16x128xf32>
    %cst_5 = arith.constant 0.000000e+00 : f32
    %6 = vector.broadcast %cst_5 : f32 to vector<16x128xf32>
    %7 = arith.maximumf %5, %6 : vector<16x128xf32>
    %8 = arith.truncf %7 : vector<16x128xf32> to vector<16x128xbf16>
    %c0_6 = arith.constant 0 : index
    %c0_7 = arith.constant 0 : index
    %9 = vector.load %arg5[%c0_6, %c0_7] : memref<16x128xbf16, #tpu.memory_space<vmem>>, vector<16x128xbf16>
    tpu.vector_store %arg5[%c0_6, %c0_7], %8 {strides = array<i32>} : memref<16x128xbf16, #tpu.memory_space<vmem>>, vector<16x128xbf16>,
    return
  }
  func.func @transform_0(%arg0: i32, %arg1: i32) -> (i32, i32) {
    %c0_i32 = arith.constant 0 : i32
    %c0_i32_0 = arith.constant 0 : i32
    return %arg0, %c0_i32 : i32, i32
  }
  func.func @transform_1(%arg0: i32, %arg1: i32) -> (i32, i32) {
    %c0_i32 = arith.constant 0 : i32
    %c0_i32_0 = arith.constant 0 : i32
    return %c0_i32, %arg1 : i32, i32
  }
  func.func @transform_2(%arg0: i32, %arg1: i32) -> (i32, i32) {
    %c0_i32 = arith.constant 0 : i32
    %c0_i32_0 = arith.constant 0 : i32
    return %arg0, %c0_i32 : i32, i32
  }
  func.func @transform_3(%arg0: i32, %arg1: i32) -> (i32, i32) {
    %c0_i32 = arith.constant 0 : i32
    return %arg0, %arg1 : i32, i32
  }
}

module attributes {stable_mosaic.version = 11 : i64} {
  func.func @_mm_kernel(%arg0: i32, %arg1: i32, %arg2: memref<64x16xbf16, #tpu.memory_space<vmem>>, %arg3: memref<16x128xbf16, #tpu.memory_space<vmem>>, %arg4: memref<64x1xf32, #tpu.memory_space<vmem>>, %arg5: memref<64x128xbf16, #tpu.memory_space<vmem>>, %arg6: memref<64x128xbf16, #tpu.memory_space<vmem>>) attributes {dimension_semantics = [#tpu.dimension_semantics<parallel>, #tpu.dimension_semantics<parallel>], iteration_bounds = array<i64: 1, 1>, scalar_prefetch = 0 : i64, scratch_operands = 0 : i64, tpu.core_type = #tpu.core_type<tc>, window_params = [{transform_indices = @transform_0, window_bounds = array<i64: 64, 16>}, {transform_indices = @transform_1, window_bounds = array<i64: 16, 128>}, {transform_indices = @transform_2, window_bounds = array<i64: 64, 1>}, {transform_indices = @transform_3, window_bounds = array<i64: 64, 128>}, {transform_indices = @transform_4, window_bounds = array<i64: 64, 128>}]} {
    %c0 = arith.constant 0 : index
    %c0_0 = arith.constant 0 : index
    %0 = vector.load %arg2[%c0, %c0_0] : memref<64x16xbf16, #tpu.memory_space<vmem>>, vector<64x16xbf16>
    %c0_1 = arith.constant 0 : index
    %c0_2 = arith.constant 0 : index
    %1 = vector.load %arg3[%c0_1, %c0_2] : memref<16x128xbf16, #tpu.memory_space<vmem>>, vector<16x128xbf16>
    %cst = arith.constant dense<0.000000e+00> : vector<64x128xf32>
    %2 = tpu.matmul %0, %1, %cst {dimension_numbers = #tpu.dot_dimension_numbers<[1], [0], [0], [1], [0, 0, 1, 1], [], []>} : vector<64x16xbf16>, vector<16x128xbf16>, vector<64x128xf32> -> vector<64x128xf32>
    %c0_3 = arith.constant 0 : index
    %c0_4 = arith.constant 0 : index
    %3 = vector.load %arg4[%c0_3, %c0_4] : memref<64x1xf32, #tpu.memory_space<vmem>>, vector<64x1xf32>
    %4 = vector.broadcast %3 : vector<64x1xf32> to vector<64x128xf32>
    %5 = arith.addf %2, %4 : vector<64x128xf32>
    %c0_5 = arith.constant 0 : index
    %c0_6 = arith.constant 0 : index
    %6 = vector.load %arg5[%c0_5, %c0_6] : memref<64x128xbf16, #tpu.memory_space<vmem>>, vector<64x128xbf16>
    %7 = arith.extf %6 : vector<64x128xbf16> to vector<64x128xf32>
    %8 = arith.addf %5, %7 : vector<64x128xf32>
    %cst_7 = arith.constant 0.000000e+00 : f32
    %9 = vector.broadcast %cst_7 : f32 to vector<64x128xf32>
    %10 = arith.maximumf %8, %9 : vector<64x128xf32>
    %11 = arith.truncf %10 : vector<64x128xf32> to vector<64x128xbf16>
    %c0_8 = arith.constant 0 : index
    %c0_9 = arith.constant 0 : index
    %12 = vector.load %arg6[%c0_8, %c0_9] : memref<64x128xbf16, #tpu.memory_space<vmem>>, vector<64x128xbf16>
    tpu.vector_store %arg6[%c0_8, %c0_9], %11 {strides = array<i32>} : memref<64x128xbf16, #tpu.memory_space<vmem>>, vector<64x128xbf16>,
    return
  }
  func.func @transform_0(%arg0: i32, %arg1: i32) -> (i32, i32) {
    %c0_i32 = arith.constant 0 : i32
    %c0_i32_0 = arith.constant 0 : i32
    return %arg0, %c0_i32 : i32, i32
  }
  func.func @transform_1(%arg0: i32, %arg1: i32) -> (i32, i32) {
    %c0_i32 = arith.constant 0 : i32
    %c0_i32_0 = arith.constant 0 : i32
    return %c0_i32, %arg1 : i32, i32
  }
  func.func @transform_2(%arg0: i32, %arg1: i32) -> (i32, i32) {
    %c0_i32 = arith.constant 0 : i32
    %c0_i32_0 = arith.constant 0 : i32
    return %arg0, %c0_i32 : i32, i32
  }
  func.func @transform_3(%arg0: i32, %arg1: i32) -> (i32, i32) {
    %c0_i32 = arith.constant 0 : i32
    return %arg0, %arg1 : i32, i32
  }
  func.func @transform_4(%arg0: i32, %arg1: i32) -> (i32, i32) {
    %c0_i32 = arith.constant 0 : i32
    return %arg0, %arg1 : i32, i32
  }
}

module attributes {stable_mosaic.version = 11 : i64} {
  func.func @_mm_kernel(%arg0: i32, %arg1: i32, %arg2: memref<128x16xbf16, #tpu.memory_space<vmem>>, %arg3: memref<16x128xbf16, #tpu.memory_space<vmem>>, %arg4: memref<1x128xf32, #tpu.memory_space<vmem>>, %arg5: memref<128x128xf32, #tpu.memory_space<vmem>>) attributes {dimension_semantics = [#tpu.dimension_semantics<parallel>, #tpu.dimension_semantics<parallel>], iteration_bounds = array<i64: 1, 1>, scalar_prefetch = 0 : i64, scratch_operands = 0 : i64, tpu.core_type = #tpu.core_type<tc>, window_params = [{transform_indices = @transform_0, window_bounds = array<i64: 128, 16>}, {transform_indices = @transform_1, window_bounds = array<i64: 16, 128>}, {transform_indices = @transform_2, window_bounds = array<i64: 1, 128>}, {transform_indices = @transform_3, window_bounds = array<i64: 128, 128>}]} {
    %c0 = arith.constant 0 : index
    %c0_0 = arith.constant 0 : index
    %0 = vector.load %arg2[%c0, %c0_0] : memref<128x16xbf16, #tpu.memory_space<vmem>>, vector<128x16xbf16>
    %c0_1 = arith.constant 0 : index
    %c0_2 = arith.constant 0 : index
    %1 = vector.load %arg3[%c0_1, %c0_2] : memref<16x128xbf16, #tpu.memory_space<vmem>>, vector<16x128xbf16>
    %cst = arith.constant dense<0.000000e+00> : vector<128x128xf32>
    %2 = tpu.matmul %0, %1, %cst {dimension_numbers = #tpu.dot_dimension_numbers<[1], [0], [0], [1], [0, 0, 1, 1], [], []>} : vector<128x16xbf16>, vector<16x128xbf16>, vector<128x128xf32> -> vector<128x128xf32>
    %c0_3 = arith.constant 0 : index
    %c0_4 = arith.constant 0 : index
    %3 = vector.load %arg4[%c0_3, %c0_4] : memref<1x128xf32, #tpu.memory_space<vmem>>, vector<1x128xf32>
    %4 = vector.broadcast %3 : vector<1x128xf32> to vector<128x128xf32>
    %5 = arith.addf %2, %4 : vector<128x128xf32>
    %c0_5 = arith.constant 0 : index
    %c0_6 = arith.constant 0 : index
    %6 = vector.load %arg5[%c0_5, %c0_6] : memref<128x128xf32, #tpu.memory_space<vmem>>, vector<128x128xf32>
    tpu.vector_store %arg5[%c0_5, %c0_6], %5 {strides = array<i32>} : memref<128x128xf32, #tpu.memory_space<vmem>>, vector<128x128xf32>,
    return
  }
  func.func @transform_0(%arg0: i32, %arg1: i32) -> (i32, i32) {
    %c0_i32 = arith.constant 0 : i32
    %c0_i32_0 = arith.constant 0 : i32
    return %arg0, %c0_i32 : i32, i32
  }
  func.func @transform_1(%arg0: i32, %arg1: i32) -> (i32, i32) {
    %c0_i32 = arith.constant 0 : i32
    %c0_i32_0 = arith.constant 0 : i32
    return %c0_i32, %arg1 : i32, i32
  }
  func.func @transform_2(%arg0: i32, %arg1: i32) -> (i32, i32) {
    %c0_i32 = arith.constant 0 : i32
    %c0_i32_0 = arith.constant 0 : i32
    return %c0_i32, %arg1 : i32, i32
  }
  func.func @transform_3(%arg0: i32, %arg1: i32) -> (i32, i32) {
    %c0_i32 = arith.constant 0 : i32
    return %arg0, %arg1 : i32, i32
  }
}

</mosaic_0001>

<llo_original>
// kernel: cnn_encoder2_forward.38
$region0: #{cnn_encoder2_forward.38}
  #allocation0 [shape = 'u32[]', space=smem, size = 0x4, offset = 0x4, fixed_abs, tag = 'smem constant byte address 0x4 - core index']
  #allocation1 [shape = 'u32[144,128]{1,0:T(1,128)}', space=vmem, size = 0x12000, scoped, tag = 'internal scratch']
  %s0 = inlined_call_operand.vmem [shape: bf16[8,152], index: 0, kind: input, shape index: {}]
  %s1 = inlined_call_operand.vmem [shape: bf16[152,512], index: 1, kind: input, shape index: {}]
  %s2 = inlined_call_operand.vmem [shape: f32[8,1], index: 2, kind: input, shape index: {}]
  %s3 = inlined_call_operand.vmem [shape: bf16[8,512], index: 3, kind: output, shape index: {}]
  %s4 = sld [smem:[#allocation0]]
  $region22: #{cnn_encoder2_forward.38} parent=0
    _
  %s6 = ssub.s32 1, %s4
  %s7 = scalar_select 0, %s6, %s4
  // Predicated region
  $region2: #{cnn_encoder2_forward.38} parent=0 // pred_check
    _
  $region3: #{cnn_encoder2_forward.38} parent=0 // pred_check_branch
    %9 = sbr.rel (0) target = $region5
  $region4: #{cnn_encoder2_forward.38} parent=0 // pred_region
    _
  $region5: #{cnn_encoder2_forward.38} parent=0 // pred_fallthru
    _
  // Predicated region
  $region6: #{cnn_encoder2_forward.38} parent=0 // pred_check
    _
  $region7: #{cnn_encoder2_forward.38} parent=0 // pred_check_branch
    %11 = sbr.rel (0) target = $region9
  $region8: #{cnn_encoder2_forward.38} parent=0 // pred_region
    _
  $region9: #{cnn_encoder2_forward.38} parent=0 // pred_fallthru
    _
  // Predicated region
  $region10: #{cnn_encoder2_forward.38} parent=0 // pred_check
    _
  $region11: #{cnn_encoder2_forward.38} parent=0 // pred_check_branch
    %13 = sbr.rel (0) target = $region13
  $region12: #{cnn_encoder2_forward.38} parent=0 // pred_region
    _
  $region13: #{cnn_encoder2_forward.38} parent=0 // pred_fallthru
    _
  %v15 = vld [vmem:[%s0] sm:$0xff]
  %v16 = vld [vmem:[%s1] sm:$0xff]
  %v17 = vld [vmem:[%s1 + $0x8] sm:$0xff]
  %v18 = vld [vmem:[%s1 + $0x10] sm:$0xff]
  %v19 = vld [vmem:[%s1 + $0x18] sm:$0xff]
  %v20 = vld [vmem:[%s1 + $0x20] sm:$0xff]
  %v21 = vld [vmem:[%s1 + $0x28] sm:$0xff]
  %v22 = vld [vmem:[%s1 + $0x30] sm:$0xff]
  %v23 = vld [vmem:[%s1 + $0x38] sm:$0xff]
  %v24 = vld [vmem:[%s1 + $0x40] sm:$0xff]
  %v25 = vld [vmem:[%s1 + $0x48] sm:$0xff]
  %v26 = vld [vmem:[%s1 + $0x50] sm:$0xff]
  %v27 = vld [vmem:[%s1 + $0x58] sm:$0xff]
  %v28 = vld [vmem:[%s1 + $0x60] sm:$0xff]
  %v29 = vld [vmem:[%s1 + $0x68] sm:$0xff]
  %v30 = vld [vmem:[%s1 + $0x70] sm:$0xff]
  %v31 = vld [vmem:[%s1 + $0x78] sm:$0xff]
  %v32 = vld [vmem:[%s1 + $0x80] sm:$0xff]
  %v33 = vld [vmem:[%s1 + $0x88] sm:$0xff]
  %v34 = vld [vmem:[%s1 + $0x90] sm:$0xff]
  %v35 = vld [vmem:[%s1 + $0x98] sm:$0xff]
  %v36 = vld [vmem:[%s1 + $0xa0] sm:$0xff]
  %v37 = vld [vmem:[%s1 + $0xa8] sm:$0xff]
  %v38 = vld [vmem:[%s1 + $0xb0] sm:$0xff]
  %v39 = vld [vmem:[%s1 + $0xb8] sm:$0xff]
  %v40 = vld [vmem:[%s1 + $0xc0] sm:$0xff]
  %v41 = vld [vmem:[%s1 + $0xc8] sm:$0xff]
  %v42 = vld [vmem:[%s1 + $0xd0] sm:$0xff]
  %v43 = vld [vmem:[%s1 + $0xd8] sm:$0xff]
  %v44 = vld [vmem:[%s1 + $0xe0] sm:$0xff]
  %v45 = vld [vmem:[%s1 + $0xe8] sm:$0xff]
  %v46 = vld [vmem:[%s1 + $0xf0] sm:$0xff]
  %v47 = vld [vmem:[%s1 + $0xf8] sm:$0xff]
  %v48 = vld [vmem:[%s1 + $0x100] sm:$0xff]
  %v49 = vld [vmem:[%s1 + $0x108] sm:$0xff]
  %v50 = vld [vmem:[%s1 + $0x110] sm:$0xff]
  %v51 = vld [vmem:[%s1 + $0x118] sm:$0xff]
  %v52 = vld [vmem:[%s1 + $0x120] sm:$0xff]
  %v53 = vld [vmem:[%s1 + $0x128] sm:$0xff]
  %v54 = vld [vmem:[%s2] sm:$0xff]
  %56 = vset.pattern.permute.xlu0 0
  %57 = vperm.xlu0 %56, %v54
  %v58 = vpop.permute.xlu0 %57
  %v61 = vunpack.c.l.b16 %v15
  %v62 = vunpack.c.h.b16 %v15
  %v63 = vpack.c.b16 %v61, %v61
  %v64 = vpack.c.b16 %v62, %v62
  %v104 = vunpack.c.l.b16 %v16
  %v105 = vunpack.c.h.b16 %v16
  %v106 = vunpack.c.l.b16 %v17
  %v107 = vunpack.c.h.b16 %v17
  %v108 = vunpack.c.l.b16 %v18
  %v109 = vunpack.c.h.b16 %v18
  %v110 = vunpack.c.l.b16 %v19
  %v111 = vunpack.c.h.b16 %v19
  %v112 = vunpack.c.l.b16 %v20
  %v113 = vunpack.c.h.b16 %v20
  %v114 = vunpack.c.l.b16 %v21
  %v115 = vunpack.c.h.b16 %v21
  %v116 = vunpack.c.l.b16 %v22
  %v117 = vunpack.c.h.b16 %v22
  %v118 = vunpack.c.l.b16 %v23
  %v119 = vunpack.c.h.b16 %v23
  %v120 = vunpack.c.l.b16 %v24
  %v121 = vunpack.c.h.b16 %v24
  %v122 = vunpack.c.l.b16 %v25
  %v123 = vunpack.c.h.b16 %v25
  %v124 = vunpack.c.l.b16 %v26
  %v125 = vunpack.c.h.b16 %v26
  %v126 = vunpack.c.l.b16 %v27
  %v127 = vunpack.c.h.b16 %v27
  %v128 = vunpack.c.l.b16 %v28
  %v129 = vunpack.c.h.b16 %v28
  %v130 = vunpack.c.l.b16 %v29
  %v131 = vunpack.c.h.b16 %v29
  %v132 = vunpack.c.l.b16 %v30
  %v133 = vunpack.c.h.b16 %v30
  %v134 = vunpack.c.l.b16 %v31
  %v135 = vunpack.c.h.b16 %v31
  %v136 = vunpack.c.l.b16 %v32
  %v137 = vunpack.c.h.b16 %v32
  %v138 = vunpack.c.l.b16 %v33
  %v139 = vunpack.c.h.b16 %v33
  %v140 = vunpack.c.l.b16 %v34
  %v141 = vunpack.c.h.b16 %v34
  %v142 = vunpack.c.l.b16 %v35
  %v143 = vunpack.c.h.b16 %v35
  %v144 = vunpack.c.l.b16 %v36
  %v145 = vunpack.c.h.b16 %v36
  %v146 = vunpack.c.l.b16 %v37
  %v147 = vunpack.c.h.b16 %v37
  %v148 = vunpack.c.l.b16 %v38
  %v149 = vunpack.c.h.b16 %v38
  %v150 = vunpack.c.l.b16 %v39
  %v151 = vunpack.c.h.b16 %v39
  %v152 = vunpack.c.l.b16 %v40
  %v153 = vunpack.c.h.b16 %v40
  %v154 = vunpack.c.l.b16 %v41
  %v155 = vunpack.c.h.b16 %v41
  %v156 = vunpack.c.l.b16 %v42
  %v157 = vunpack.c.h.b16 %v42
  %v158 = vunpack.c.l.b16 %v43
  %v159 = vunpack.c.h.b16 %v43
  %v160 = vunpack.c.l.b16 %v44
  %v161 = vunpack.c.h.b16 %v44
  %v162 = vunpack.c.l.b16 %v45
  %v163 = vunpack.c.h.b16 %v45
  %v164 = vunpack.c.l.b16 %v46
  %v165 = vunpack.c.h.b16 %v46
  %v166 = vunpack.c.l.b16 %v47
  %v167 = vunpack.c.h.b16 %v47
  %v168 = vunpack.c.l.b16 %v48
  %v169 = vunpack.c.h.b16 %v48
  %v170 = vunpack.c.l.b16 %v49
  %v171 = vunpack.c.h.b16 %v49
  %v172 = vunpack.c.l.b16 %v50
  %v173 = vunpack.c.h.b16 %v50
  %v174 = vunpack.c.l.b16 %v51
  %v175 = vunpack.c.h.b16 %v51
  %v176 = vunpack.c.l.b16 %v52
  %v177 = vunpack.c.h.b16 %v52
  %v178 = vunpack.c.l.b16 %v53
  %v179 = vunpack.c.h.b16 %v53
  %v180 = vpack.c.b16 %v108, %v104
  %v181 = vpack.c.b16 %v109, %v105
  %v182 = vpack.c.b16 %v110, %v106
  %v183 = vpack.c.b16 %v111, %v107
  %v184 = vpack.c.b16 %v116, %v112
  %v185 = vpack.c.b16 %v117, %v113
  %v186 = vpack.c.b16 %v118, %v114
  %v187 = vpack.c.b16 %v119, %v115
  %v188 = vpack.c.b16 %v124, %v120
  %v189 = vpack.c.b16 %v125, %v121
  %v190 = vpack.c.b16 %v126, %v122
  %v191 = vpack.c.b16 %v127, %v123
  %v192 = vpack.c.b16 %v132, %v128
  %v193 = vpack.c.b16 %v133, %v129
  %v194 = vpack.c.b16 %v134, %v130
  %v195 = vpack.c.b16 %v135, %v131
  %v196 = vpack.c.b16 %v140, %v136
  %v197 = vpack.c.b16 %v141, %v137
  %v198 = vpack.c.b16 %v142, %v138
  %v199 = vpack.c.b16 %v143, %v139
  %v200 = vpack.c.b16 %v148, %v144
  %v201 = vpack.c.b16 %v149, %v145
  %v202 = vpack.c.b16 %v150, %v146
  %v203 = vpack.c.b16 %v151, %v147
  %v204 = vpack.c.b16 %v156, %v152
  %v205 = vpack.c.b16 %v157, %v153
  %v206 = vpack.c.b16 %v158, %v154
  %v207 = vpack.c.b16 %v159, %v155
  %v208 = vpack.c.b16 %v164, %v160
  %v209 = vpack.c.b16 %v165, %v161
  %v210 = vpack.c.b16 %v166, %v162
  %v211 = vpack.c.b16 %v167, %v163
  %v212 = vpack.c.b16 %v172, %v168
  %v213 = vpack.c.b16 %v173, %v169
  %v214 = vpack.c.b16 %v174, %v170
  %v215 = vpack.c.b16 %v175, %v171
  %v216 = vpack.c.b16 %v176, %v176
  %v217 = vpack.c.b16 %v177, %v177
  %v218 = vpack.c.b16 %v178, %v178
  %v219 = vpack.c.b16 %v179, %v179
  %vm256 = vcmask 195584
  %v258 = vsel %vm256, %v64, 0
  %vm260 = vcmask 1043456
  %v262 = vsel %vm260, %v216, 0
  %v265 = vsel %vm260, %v217, 0
  %v268 = vsel %vm260, %v218, 0
  %v271 = vsel %vm260, %v219, 0
  %273 = vmatprep.subr.bf16.mxu0 %v181
  %274 = vmatpush1.bf16.msra.mxu0 %v180
  %275 = vmatprep.subr.bf16.mxu0 %v185
  %276 = vmatpush1.bf16.msra.mxu0 %v184
  %277 = vmatprep.subr.bf16.mxu0 %v189
  %278 = vmatpush1.bf16.msra.mxu0 %v188
  %279 = vmatprep.subr.bf16.mxu0 %v193
  %280 = vmatpush1.bf16.msra.mxu0 %v192
  %281 = vmatprep.subr.bf16.mxu0 %v197
  %282 = vmatpush1.bf16.msra.mxu0 %v196
  %283 = vmatprep.subr.bf16.mxu0 %v201
  %284 = vmatpush1.bf16.msra.mxu0 %v200
  %285 = vmatprep.subr.bf16.mxu0 %v205
  %286 = vmatpush1.bf16.msra.mxu0 %v204
  %287 = vmatprep.subr.bf16.mxu0 %v209
  %288 = vmatpush1.bf16.msra.mxu0 %v208
  %289 = vmatprep.subr.bf16.mxu0 %v213
  %290 = vmatpush1.bf16.msra.mxu0 %v212
  %291 = vmatprep.subr.bf16.mxu0 %v265
  %292 = vmatpush1.bf16.msra.mxu0 %v262
  %293 = vmatprep.subr.bf16.mxu0 0
  %294 = vmatpush1.bf16.msra.mxu0 0
  %295 = vmatprep.subr.bf16.mxu0 0
  %296 = vmatpush1.bf16.msra.mxu0 0
  %297 = vmatprep.subr.bf16.mxu0 0
  %298 = vmatpush1.bf16.msra.mxu0 0
  %299 = vmatprep.subr.bf16.mxu0 0
  %300 = vmatpush1.bf16.msra.mxu0 0
  %301 = vmatprep.subr.bf16.mxu0 0
  %302 = vmatpush1.bf16.msra.mxu0 0
  %303 = vmatprep.subr.bf16.mxu0 0
  %304 = vmatpush1.bf16.msra.mxu0 0
  %305 = vmatprep.mubr.bf16.mxu0 %v258
  %306 = vmatmul.mubr.bf16.gmra.mrb[0].mxu0 %v63
  %v307 = vpop.f32.mrb[0].mxu0
  %v308 = vadd.f32 %v58, %v307
  %v309 = vpop.f32.mrb[0].mxu0
  %v310 = vadd.f32 %v58, %v309
  %v311 = vpop.f32.mrb[0].mxu0
  %v312 = vpop.f32.mrb[0].mxu0
  %313 = vdwg.mxu0
  %314 = vmatprep.subr.bf16.mxu0 %v183
  %315 = vmatpush1.bf16.msra.mxu0 %v182
  %316 = vmatprep.subr.bf16.mxu0 %v187
  %317 = vmatpush1.bf16.msra.mxu0 %v186
  %318 = vmatprep.subr.bf16.mxu0 %v191
  %319 = vmatpush1.bf16.msra.mxu0 %v190
  %320 = vmatprep.subr.bf16.mxu0 %v195
  %321 = vmatpush1.bf16.msra.mxu0 %v194
  %322 = vmatprep.subr.bf16.mxu0 %v199
  %323 = vmatpush1.bf16.msra.mxu0 %v198
  %324 = vmatprep.subr.bf16.mxu0 %v203
  %325 = vmatpush1.bf16.msra.mxu0 %v202
  %326 = vmatprep.subr.bf16.mxu0 %v207
  %327 = vmatpush1.bf16.msra.mxu0 %v206
  %328 = vmatprep.subr.bf16.mxu0 %v211
  %329 = vmatpush1.bf16.msra.mxu0 %v210
  %330 = vmatprep.subr.bf16.mxu0 %v215
  %331 = vmatpush1.bf16.msra.mxu0 %v214
  %332 = vmatprep.subr.bf16.mxu0 %v271
  %333 = vmatpush1.bf16.msra.mxu0 %v268
  %334 = vmatprep.subr.bf16.mxu0 0
  %335 = vmatpush1.bf16.msra.mxu0 0
  %336 = vmatprep.subr.bf16.mxu0 0
  %337 = vmatpush1.bf16.msra.mxu0 0
  %338 = vmatprep.subr.bf16.mxu0 0
  %339 = vmatpush1.bf16.msra.mxu0 0
  %340 = vmatprep.subr.bf16.mxu0 0
  %341 = vmatpush1.bf16.msra.mxu0 0
  %342 = vmatprep.subr.bf16.mxu0 0
  %343 = vmatpush1.bf16.msra.mxu0 0
  %344 = vmatprep.subr.bf16.mxu0 0
  %345 = vmatpush1.bf16.msra.mxu0 0
  %346 = vmatprep.mubr.bf16.mxu0 %v258
  %347 = vmatmul.mubr.bf16.gmra.mrb[0].mxu0 %v63
  %v348 = vpop.f32.mrb[0].mxu0
  %v349 = vadd.f32 %v58, %v348
  %v350 = vpop.f32.mrb[0].mxu0
  %v351 = vadd.f32 %v58, %v350
  %v352 = vpop.f32.mrb[0].mxu0
  %v353 = vpop.f32.mrb[0].mxu0
  %354 = vdwg.mxu0
  %v355 = vmax.f32 %v308, 0.0
  %v356 = vmax.f32 %v310, 0.0
  %v357 = vmax.f32 %v349, 0.0
  %v358 = vmax.f32 %v351, 0.0
  %v359 = vpack.c.bf16 %v355, %v355
  %v360 = vpack.c.bf16 %v356, %v356
  %v361 = vpack.c.bf16 %v357, %v357
  %v362 = vpack.c.bf16 %v358, %v358
  %v367 = vunpack.c.l.b16 %v359
  %v368 = vunpack.c.l.b16 %v360
  %v369 = vunpack.c.l.b16 %v361
  %v370 = vunpack.c.l.b16 %v362
  %v371 = vpack.c.b16 %v368, %v367
  %v372 = vpack.c.b16 %v370, %v369
  %375 = vst [vmem:[%s3] sm:$0xff] %v371
  %376 = vst [vmem:[%s3 + $0x8] sm:$0xff] %v372
  // Predicated region
  $region14: #{cnn_encoder2_forward.38} parent=0 // pred_check
    _
  $region15: #{cnn_encoder2_forward.38} parent=0 // pred_check_branch
    %378 = sbr.rel (0) target = $region17
  $region16: #{cnn_encoder2_forward.38} parent=0 // pred_region
    _
  $region17: #{cnn_encoder2_forward.38} parent=0 // pred_fallthru
    _
  // Predicated region
  $region18: #{cnn_encoder2_forward.38} parent=0 // pred_check
    _
  $region19: #{cnn_encoder2_forward.38} parent=0 // pred_check_branch
    %380 = sbr.rel (0) target = $region21
  $region20: #{cnn_encoder2_forward.38} parent=0 // pred_region
    _
  $region21: #{cnn_encoder2_forward.38} parent=0 // pred_fallthru
    _

// kernel: cnn_encoder2_forward.39
$region0: #{cnn_encoder2_forward.39}
  #allocation0 [shape = 'u32[]', space=smem, size = 0x4, offset = 0x4, fixed_abs, tag = 'smem constant byte address 0x4 - core index']
  #allocation1 [shape = 'u32[144,128]{1,0:T(1,128)}', space=vmem, size = 0x12000, scoped, tag = 'internal scratch']
  %s0 = inlined_call_operand.vmem [shape: bf16[9,8,128], index: 0, kind: input, shape index: {}]
  %s1 = inlined_call_operand.vmem [shape: bf16[8,128], index: 1, kind: output, shape index: {}]
  %s2 = sld [smem:[#allocation0]]
  $region14: #{cnn_encoder2_forward.39} parent=0
    _
  %s4 = ssub.s32 1, %s2
  %s5 = scalar_select 0, %s4, %s2
  // Predicated region
  $region2: #{cnn_encoder2_forward.39} parent=0 // pred_check
    _
  $region3: #{cnn_encoder2_forward.39} parent=0 // pred_check_branch
    %7 = sbr.rel (0) target = $region5
  $region4: #{cnn_encoder2_forward.39} parent=0 // pred_region
    _
  $region5: #{cnn_encoder2_forward.39} parent=0 // pred_fallthru
    _
  %v8 = vld [vmem:[%s0] sm:$0xf]
  %s9 = scalar_lea.vmem %s0, 4
  %v10 = vld [vmem:[%s9] sm:$0xf]
  %v11 = vmax.bf16 %v8, %v10
  %s12 = scalar_lea.vmem %s0, 8
  %v13 = vld [vmem:[%s12] sm:$0xf]
  %v14 = vmax.bf16 %v11, %v13
  %s15 = scalar_lea.vmem %s0, 12
  %v16 = vld [vmem:[%s15] sm:$0xf]
  %v17 = vmax.bf16 %v14, %v16
  %s18 = scalar_lea.vmem %s0, 16
  %v19 = vld [vmem:[%s18] sm:$0xf]
  %v20 = vmax.bf16 %v17, %v19
  %s21 = scalar_lea.vmem %s0, 20
  %v22 = vld [vmem:[%s21] sm:$0xf]
  %v23 = vmax.bf16 %v20, %v22
  %s24 = scalar_lea.vmem %s0, 24
  %v25 = vld [vmem:[%s24] sm:$0xf]
  %v26 = vmax.bf16 %v23, %v25
  %s27 = scalar_lea.vmem %s0, 28
  %v28 = vld [vmem:[%s27] sm:$0xf]
  %v29 = vmax.bf16 %v26, %v28
  %s30 = scalar_lea.vmem %s0, 32
  %v31 = vld [vmem:[%s30] sm:$0xf]
  %v32 = vmax.bf16 %v29, %v31
  %33 = vst [vmem:[%s1] sm:$0xf] %v32
  // Predicated region
  $region6: #{cnn_encoder2_forward.39} parent=0 // pred_check
    _
  $region7: #{cnn_encoder2_forward.39} parent=0 // pred_check_branch
    %35 = sbr.rel (0) target = $region9
  $region8: #{cnn_encoder2_forward.39} parent=0 // pred_region
    _
  $region9: #{cnn_encoder2_forward.39} parent=0 // pred_fallthru
    _
  // Predicated region
  $region10: #{cnn_encoder2_forward.39} parent=0 // pred_check
    _
  $region11: #{cnn_encoder2_forward.39} parent=0 // pred_check_branch
    %37 = sbr.rel (0) target = $region13
  $region12: #{cnn_encoder2_forward.39} parent=0 // pred_region
    _
  $region13: #{cnn_encoder2_forward.39} parent=0 // pred_fallthru
    _

// kernel: cnn_encoder2_forward.40
$region0: #{cnn_encoder2_forward.40}
  #allocation0 [shape = 'u32[]', space=smem, size = 0x4, offset = 0x4, fixed_abs, tag = 'smem constant byte address 0x4 - core index']
  #allocation1 [shape = 'u32[144,128]{1,0:T(1,128)}', space=vmem, size = 0x12000, scoped, tag = 'internal scratch']
  %s0 = inlined_call_operand.vmem [shape: bf16[8,8], index: 0, kind: input, shape index: {}]
  %s1 = inlined_call_operand.vmem [shape: bf16[8,128], index: 1, kind: input, shape index: {}]
  %s2 = inlined_call_operand.vmem [shape: f32[8,1], index: 2, kind: input, shape index: {}]
  %s3 = inlined_call_operand.vmem [shape: bf16[8,128], index: 3, kind: output, shape index: {}]
  %s4 = sld [smem:[#allocation0]]
  $region22: #{cnn_encoder2_forward.40} parent=0
    _
  %s6 = ssub.s32 1, %s4
  %s7 = scalar_select 0, %s6, %s4
  // Predicated region
  $region2: #{cnn_encoder2_forward.40} parent=0 // pred_check
    _
  $region3: #{cnn_encoder2_forward.40} parent=0 // pred_check_branch
    %9 = sbr.rel (0) target = $region5
  $region4: #{cnn_encoder2_forward.40} parent=0 // pred_region
    _
  $region5: #{cnn_encoder2_forward.40} parent=0 // pred_fallthru
    _
  // Predicated region
  $region6: #{cnn_encoder2_forward.40} parent=0 // pred_check
    _
  $region7: #{cnn_encoder2_forward.40} parent=0 // pred_check_branch
    %11 = sbr.rel (0) target = $region9
  $region8: #{cnn_encoder2_forward.40} parent=0 // pred_region
    _
  $region9: #{cnn_encoder2_forward.40} parent=0 // pred_fallthru
    _
  // Predicated region
  $region10: #{cnn_encoder2_forward.40} parent=0 // pred_check
    _
  $region11: #{cnn_encoder2_forward.40} parent=0 // pred_check_branch
    %13 = sbr.rel (0) target = $region13
  $region12: #{cnn_encoder2_forward.40} parent=0 // pred_region
    _
  $region13: #{cnn_encoder2_forward.40} parent=0 // pred_fallthru
    _
  %v15 = vld [vmem:[%s0] sm:$0xf]
  %v16 = vld [vmem:[%s1] sm:$0xf]
  %v17 = vld [vmem:[%s2] sm:$0xff]
  %19 = vset.pattern.permute.xlu0 0
  %20 = vperm.xlu0 %19, %v17
  %v21 = vpop.permute.xlu0 %20
  %vm23 = vcmask 64512
  %v25 = vsel %vm23, %v15, 0
  %vm27 = vcmask 1043456
  %v29 = vsel %vm27, %v16, 0
  %31 = vmatprep.subr.bf16.mxu0 0
  %32 = vmatpush1.bf16.msra.mxu0 %v29
  %33 = vmatprep.subr.bf16.mxu0 0
  %34 = vmatpush1.bf16.msra.mxu0 0
  %35 = vmatprep.subr.bf16.mxu0 0
  %36 = vmatpush1.bf16.msra.mxu0 0
  %37 = vmatprep.subr.bf16.mxu0 0
  %38 = vmatpush1.bf16.msra.mxu0 0
  %39 = vmatprep.subr.bf16.mxu0 0
  %40 = vmatpush1.bf16.msra.mxu0 0
  %41 = vmatprep.subr.bf16.mxu0 0
  %42 = vmatpush1.bf16.msra.mxu0 0
  %43 = vmatprep.subr.bf16.mxu0 0
  %44 = vmatpush1.bf16.msra.mxu0 0
  %45 = vmatprep.subr.bf16.mxu0 0
  %46 = vmatpush1.bf16.msra.mxu0 0
  %47 = vmatprep.subr.bf16.mxu0 0
  %48 = vmatpush1.bf16.msra.mxu0 0
  %49 = vmatprep.subr.bf16.mxu0 0
  %50 = vmatpush1.bf16.msra.mxu0 0
  %51 = vmatprep.subr.bf16.mxu0 0
  %52 = vmatpush1.bf16.msra.mxu0 0
  %53 = vmatprep.subr.bf16.mxu0 0
  %54 = vmatpush1.bf16.msra.mxu0 0
  %55 = vmatprep.subr.bf16.mxu0 0
  %56 = vmatpush1.bf16.msra.mxu0 0
  %57 = vmatprep.subr.bf16.mxu0 0
  %58 = vmatpush1.bf16.msra.mxu0 0
  %59 = vmatprep.subr.bf16.mxu0 0
  %60 = vmatpush1.bf16.msra.mxu0 0
  %61 = vmatprep.subr.bf16.mxu0 0
  %62 = vmatpush1.bf16.msra.mxu0 0
  %63 = vmatprep.mubr.bf16.mxu0 0
  %64 = vmatmul.mubr.bf16.gmra.mrb[0].mxu0 %v25
  %v65 = vpop.f32.mrb[0].mxu0
  %v66 = vadd.f32 %v21, %v65
  %v67 = vpop.f32.mrb[0].mxu0
  %v68 = vpop.f32.mrb[0].mxu0
  %v69 = vpop.f32.mrb[0].mxu0
  %70 = vdwg.mxu0
  %v71 = vmax.f32 %v66, 0.0
  %v72 = vpack.c.bf16 %v71, %v71
  %73 = vst [vmem:[%s3] sm:$0xf] %v72
  // Predicated region
  $region14: #{cnn_encoder2_forward.40} parent=0 // pred_check
    _
  $region15: #{cnn_encoder2_forward.40} parent=0 // pred_check_branch
    %75 = sbr.rel (0) target = $region17
  $region16: #{cnn_encoder2_forward.40} parent=0 // pred_region
    _
  $region17: #{cnn_encoder2_forward.40} parent=0 // pred_fallthru
    _
  // Predicated region
  $region18: #{cnn_encoder2_forward.40} parent=0 // pred_check
    _
  $region19: #{cnn_encoder2_forward.40} parent=0 // pred_check_branch
    %77 = sbr.rel (0) target = $region21
  $region20: #{cnn_encoder2_forward.40} parent=0 // pred_region
    _
  $region21: #{cnn_encoder2_forward.40} parent=0 // pred_fallthru
    _

// kernel: cnn_encoder2_forward.41
$region0: #{cnn_encoder2_forward.41}
  #allocation0 [shape = 'u32[]', space=smem, size = 0x4, offset = 0x4, fixed_abs, tag = 'smem constant byte address 0x4 - core index']
  #allocation1 [shape = 'u32[144,128]{1,0:T(1,128)}', space=vmem, size = 0x12000, scoped, tag = 'internal scratch']
  %s0 = inlined_call_operand.vmem [shape: bf16[8,72], index: 0, kind: input, shape index: {}]
  %s1 = inlined_call_operand.vmem [shape: bf16[72,128], index: 1, kind: input, shape index: {}]
  %s2 = inlined_call_operand.vmem [shape: f32[8,1], index: 2, kind: input, shape index: {}]
  %s3 = inlined_call_operand.vmem [shape: bf16[8,128], index: 3, kind: output, shape index: {}]
  %s4 = sld [smem:[#allocation0]]
  $region22: #{cnn_encoder2_forward.41} parent=0
    _
  %s6 = ssub.s32 1, %s4
  %s7 = scalar_select 0, %s6, %s4
  // Predicated region
  $region2: #{cnn_encoder2_forward.41} parent=0 // pred_check
    _
  $region3: #{cnn_encoder2_forward.41} parent=0 // pred_check_branch
    %9 = sbr.rel (0) target = $region5
  $region4: #{cnn_encoder2_forward.41} parent=0 // pred_region
    _
  $region5: #{cnn_encoder2_forward.41} parent=0 // pred_fallthru
    _
  // Predicated region
  $region6: #{cnn_encoder2_forward.41} parent=0 // pred_check
    _
  $region7: #{cnn_encoder2_forward.41} parent=0 // pred_check_branch
    %11 = sbr.rel (0) target = $region9
  $region8: #{cnn_encoder2_forward.41} parent=0 // pred_region
    _
  $region9: #{cnn_encoder2_forward.41} parent=0 // pred_fallthru
    _
  // Predicated region
  $region10: #{cnn_encoder2_forward.41} parent=0 // pred_check
    _
  $region11: #{cnn_encoder2_forward.41} parent=0 // pred_check_branch
    %13 = sbr.rel (0) target = $region13
  $region12: #{cnn_encoder2_forward.41} parent=0 // pred_region
    _
  $region13: #{cnn_encoder2_forward.41} parent=0 // pred_fallthru
    _
  %v15 = vld [vmem:[%s0] sm:$0xf]
  %v16 = vld [vmem:[%s1] sm:$0xf]
  %v17 = vld [vmem:[%s1 + $0x4] sm:$0xf]
  %v18 = vld [vmem:[%s1 + $0x8] sm:$0xf]
  %v19 = vld [vmem:[%s1 + $0xc] sm:$0xf]
  %v20 = vld [vmem:[%s1 + $0x10] sm:$0xf]
  %v21 = vld [vmem:[%s1 + $0x14] sm:$0xf]
  %v22 = vld [vmem:[%s1 + $0x18] sm:$0xf]
  %v23 = vld [vmem:[%s1 + $0x1c] sm:$0xf]
  %v24 = vld [vmem:[%s1 + $0x20] sm:$0xf]
  %v25 = vld [vmem:[%s2] sm:$0xff]
  %27 = vset.pattern.permute.xlu0 0
  %28 = vperm.xlu0 %27, %v25
  %v29 = vpop.permute.xlu0 %28
  %v40 = vunpack.c.l.b16 %v16
  %v41 = vunpack.c.l.b16 %v17
  %v42 = vunpack.c.l.b16 %v18
  %v43 = vunpack.c.l.b16 %v19
  %v44 = vunpack.c.l.b16 %v20
  %v45 = vunpack.c.l.b16 %v21
  %v46 = vunpack.c.l.b16 %v22
  %v47 = vunpack.c.l.b16 %v23
  %v48 = vunpack.c.l.b16 %v24
  %v49 = vpack.c.b16 %v41, %v40
  %v50 = vpack.c.b16 %v43, %v42
  %v51 = vpack.c.b16 %v45, %v44
  %v52 = vpack.c.b16 %v47, %v46
  %v53 = vpack.c.b16 %v48, %v48
  %vm58 = vcmask 588800
  %v60 = vsel %vm58, %v15, 0
  %vm62 = vcmask 1043456
  %v64 = vsel %vm62, %v53, 0
  %66 = vmatprep.subr.bf16.mxu0 0
  %67 = vmatpush1.bf16.msra.mxu0 %v49
  %68 = vmatprep.subr.bf16.mxu0 0
  %69 = vmatpush1.bf16.msra.mxu0 %v50
  %70 = vmatprep.subr.bf16.mxu0 0
  %71 = vmatpush1.bf16.msra.mxu0 %v51
  %72 = vmatprep.subr.bf16.mxu0 0
  %73 = vmatpush1.bf16.msra.mxu0 %v52
  %74 = vmatprep.subr.bf16.mxu0 0
  %75 = vmatpush1.bf16.msra.mxu0 %v64
  %76 = vmatprep.subr.bf16.mxu0 0
  %77 = vmatpush1.bf16.msra.mxu0 0
  %78 = vmatprep.subr.bf16.mxu0 0
  %79 = vmatpush1.bf16.msra.mxu0 0
  %80 = vmatprep.subr.bf16.mxu0 0
  %81 = vmatpush1.bf16.msra.mxu0 0
  %82 = vmatprep.subr.bf16.mxu0 0
  %83 = vmatpush1.bf16.msra.mxu0 0
  %84 = vmatprep.subr.bf16.mxu0 0
  %85 = vmatpush1.bf16.msra.mxu0 0
  %86 = vmatprep.subr.bf16.mxu0 0
  %87 = vmatpush1.bf16.msra.mxu0 0
  %88 = vmatprep.subr.bf16.mxu0 0
  %89 = vmatpush1.bf16.msra.mxu0 0
  %90 = vmatprep.subr.bf16.mxu0 0
  %91 = vmatpush1.bf16.msra.mxu0 0
  %92 = vmatprep.subr.bf16.mxu0 0
  %93 = vmatpush1.bf16.msra.mxu0 0
  %94 = vmatprep.subr.bf16.mxu0 0
  %95 = vmatpush1.bf16.msra.mxu0 0
  %96 = vmatprep.subr.bf16.mxu0 0
  %97 = vmatpush1.bf16.msra.mxu0 0
  %98 = vmatprep.mubr.bf16.mxu0 0
  %99 = vmatmul.mubr.bf16.gmra.mrb[0].mxu0 %v60
  %v100 = vpop.f32.mrb[0].mxu0
  %v101 = vadd.f32 %v29, %v100
  %v102 = vpop.f32.mrb[0].mxu0
  %v103 = vpop.f32.mrb[0].mxu0
  %v104 = vpop.f32.mrb[0].mxu0
  %105 = vdwg.mxu0
  %v106 = vmax.f32 %v101, 0.0
  %v107 = vpack.c.bf16 %v106, %v106
  %108 = vst [vmem:[%s3] sm:$0xf] %v107
  // Predicated region
  $region14: #{cnn_encoder2_forward.41} parent=0 // pred_check
    _
  $region15: #{cnn_encoder2_forward.41} parent=0 // pred_check_branch
    %110 = sbr.rel (0) target = $region17
  $region16: #{cnn_encoder2_forward.41} parent=0 // pred_region
    _
  $region17: #{cnn_encoder2_forward.41} parent=0 // pred_fallthru
    _
  // Predicated region
  $region18: #{cnn_encoder2_forward.41} parent=0 // pred_check
    _
  $region19: #{cnn_encoder2_forward.41} parent=0 // pred_check_branch
    %112 = sbr.rel (0) target = $region21
  $region20: #{cnn_encoder2_forward.41} parent=0 // pred_region
    _
  $region21: #{cnn_encoder2_forward.41} parent=0 // pred_fallthru
    _

// kernel: cnn_encoder2_forward.42
$region0: #{cnn_encoder2_forward.42}
  #allocation0 [shape = 'u32[]', space=smem, size = 0x4, offset = 0x4, fixed_abs, tag = 'smem constant byte address 0x4 - core index']
  #allocation1 [shape = 'u32[144,128]{1,0:T(1,128)}', space=vmem, size = 0x12000, scoped, tag = 'internal scratch']
  %s0 = inlined_call_operand.vmem [shape: bf16[32,8], index: 0, kind: input, shape index: {}]
  %s1 = inlined_call_operand.vmem [shape: bf16[8,128], index: 1, kind: input, shape index: {}]
  %s2 = inlined_call_operand.vmem [shape: f32[32,1], index: 2, kind: input, shape index: {}]
  %s3 = inlined_call_operand.vmem [shape: bf16[32,128], index: 3, kind: output, shape index: {}]
  %s4 = sld [smem:[#allocation0]]
  $region22: #{cnn_encoder2_forward.42} parent=0
    _
  %s6 = ssub.s32 1, %s4
  %s7 = scalar_select 0, %s6, %s4
  // Predicated region
  $region2: #{cnn_encoder2_forward.42} parent=0 // pred_check
    _
  $region3: #{cnn_encoder2_forward.42} parent=0 // pred_check_branch
    %9 = sbr.rel (0) target = $region5
  $region4: #{cnn_encoder2_forward.42} parent=0 // pred_region
    _
  $region5: #{cnn_encoder2_forward.42} parent=0 // pred_fallthru
    _
  // Predicated region
  $region6: #{cnn_encoder2_forward.42} parent=0 // pred_check
    _
  $region7: #{cnn_encoder2_forward.42} parent=0 // pred_check_branch
    %11 = sbr.rel (0) target = $region9
  $region8: #{cnn_encoder2_forward.42} parent=0 // pred_region
    _
  $region9: #{cnn_encoder2_forward.42} parent=0 // pred_fallthru
    _
  // Predicated region
  $region10: #{cnn_encoder2_forward.42} parent=0 // pred_check
    _
  $region11: #{cnn_encoder2_forward.42} parent=0 // pred_check_branch
    %13 = sbr.rel (0) target = $region13
  $region12: #{cnn_encoder2_forward.42} parent=0 // pred_region
    _
  $region13: #{cnn_encoder2_forward.42} parent=0 // pred_fallthru
    _
  %v15 = vld [vmem:[%s0] sm:$0xf]
  %v16 = vld [vmem:[%s0 + $0x4] sm:$0xf]
  %v17 = vld [vmem:[%s0 + $0x8] sm:$0xf]
  %v18 = vld [vmem:[%s0 + $0xc] sm:$0xf]
  %v19 = vld [vmem:[%s1] sm:$0xf]
  %v20 = vld [vmem:[%s2] sm:$0xff]
  %v21 = vld [vmem:[%s2 + $0x8] sm:$0xff]
  %v22 = vld [vmem:[%s2 + $0x10] sm:$0xff]
  %v23 = vld [vmem:[%s2 + $0x18] sm:$0xff]
  %25 = vset.pattern.permute.xlu0 0
  %26 = vperm.xlu0 %25, %v20
  %v27 = vpop.permute.xlu0 %26
  %30 = vset.pattern.permute.xlu0 0
  %31 = vperm.xlu0 %30, %v21
  %v32 = vpop.permute.xlu0 %31
  %35 = vset.pattern.permute.xlu0 0
  %36 = vperm.xlu0 %35, %v22
  %v37 = vpop.permute.xlu0 %36
  %40 = vset.pattern.permute.xlu0 0
  %41 = vperm.xlu0 %40, %v23
  %v42 = vpop.permute.xlu0 %41
  %v48 = vunpack.c.l.b16 %v15
  %v49 = vunpack.c.l.b16 %v16
  %v50 = vunpack.c.l.b16 %v17
  %v51 = vunpack.c.l.b16 %v18
  %v52 = vpack.c.b16 %v49, %v48
  %v53 = vpack.c.b16 %v51, %v50
  %vm54 = vcmask 64512
  %v56 = vsel %vm54, %v52, 0
  %v59 = vsel %vm54, %v53, 0
  %vm61 = vcmask 1043456
  %v63 = vsel %vm61, %v19, 0
  %65 = vmatprep.subr.bf16.mxu0 0
  %66 = vmatpush1.bf16.msra.mxu0 %v63
  %67 = vmatprep.subr.bf16.mxu0 0
  %68 = vmatpush1.bf16.msra.mxu0 0
  %69 = vmatprep.subr.bf16.mxu0 0
  %70 = vmatpush1.bf16.msra.mxu0 0
  %71 = vmatprep.subr.bf16.mxu0 0
  %72 = vmatpush1.bf16.msra.mxu0 0
  %73 = vmatprep.subr.bf16.mxu0 0
  %74 = vmatpush1.bf16.msra.mxu0 0
  %75 = vmatprep.subr.bf16.mxu0 0
  %76 = vmatpush1.bf16.msra.mxu0 0
  %77 = vmatprep.subr.bf16.mxu0 0
  %78 = vmatpush1.bf16.msra.mxu0 0
  %79 = vmatprep.subr.bf16.mxu0 0
  %80 = vmatpush1.bf16.msra.mxu0 0
  %81 = vmatprep.subr.bf16.mxu0 0
  %82 = vmatpush1.bf16.msra.mxu0 0
  %83 = vmatprep.subr.bf16.mxu0 0
  %84 = vmatpush1.bf16.msra.mxu0 0
  %85 = vmatprep.subr.bf16.mxu0 0
  %86 = vmatpush1.bf16.msra.mxu0 0
  %87 = vmatprep.subr.bf16.mxu0 0
  %88 = vmatpush1.bf16.msra.mxu0 0
  %89 = vmatprep.subr.bf16.mxu0 0
  %90 = vmatpush1.bf16.msra.mxu0 0
  %91 = vmatprep.subr.bf16.mxu0 0
  %92 = vmatpush1.bf16.msra.mxu0 0
  %93 = vmatprep.subr.bf16.mxu0 0
  %94 = vmatpush1.bf16.msra.mxu0 0
  %95 = vmatprep.subr.bf16.mxu0 0
  %96 = vmatpush1.bf16.msra.mxu0 0
  %97 = vmatprep.mubr.bf16.mxu0 0
  %98 = vmatmul.mubr.bf16.gmra.mrb[0].mxu0 %v56
  %v99 = vpop.f32.mrb[0].mxu0
  %v100 = vadd.f32 %v27, %v99
  %v101 = vpop.f32.mrb[0].mxu0
  %v102 = vpop.f32.mrb[0].mxu0
  %v103 = vadd.f32 %v32, %v102
  %v104 = vpop.f32.mrb[0].mxu0
  %105 = vmatprep.mubr.bf16.mxu0 0
  %106 = vmatmul.mubr.bf16.gmra.mrb[0].mxu0 %v59
  %v107 = vpop.f32.mrb[0].mxu0
  %v108 = vadd.f32 %v37, %v107
  %v109 = vpop.f32.mrb[0].mxu0
  %v110 = vpop.f32.mrb[0].mxu0
  %v111 = vadd.f32 %v42, %v110
  %v112 = vpop.f32.mrb[0].mxu0
  %113 = vdwg.mxu0
  %v114 = vpack.c.bf16 %v103, %v100
  %v115 = vpack.c.bf16 %v111, %v108
  %v118 = vunpack.c.l.b16 %v114
  %v119 = vunpack.c.h.b16 %v114
  %v120 = vunpack.c.l.b16 %v115
  %v121 = vunpack.c.h.b16 %v115
  %v122 = vpack.c.b16 %v118, %v118
  %v123 = vpack.c.b16 %v119, %v119
  %v124 = vpack.c.b16 %v120, %v120
  %v125 = vpack.c.b16 %v121, %v121
  %130 = vst [vmem:[%s3] sm:$0xf] %v122
  %131 = vst [vmem:[%s3 + $0x4] sm:$0xf] %v123
  %132 = vst [vmem:[%s3 + $0x8] sm:$0xf] %v124
  %133 = vst [vmem:[%s3 + $0xc] sm:$0xf] %v125
  // Predicated region
  $region14: #{cnn_encoder2_forward.42} parent=0 // pred_check
    _
  $region15: #{cnn_encoder2_forward.42} parent=0 // pred_check_branch
    %135 = sbr.rel (0) target = $region17
  $region16: #{cnn_encoder2_forward.42} parent=0 // pred_region
    _
  $region17: #{cnn_encoder2_forward.42} parent=0 // pred_fallthru
    _
  // Predicated region
  $region18: #{cnn_encoder2_forward.42} parent=0 // pred_check
    _
  $region19: #{cnn_encoder2_forward.42} parent=0 // pred_check_branch
    %137 = sbr.rel (0) target = $region21
  $region20: #{cnn_encoder2_forward.42} parent=0 // pred_region
    _
  $region21: #{cnn_encoder2_forward.42} parent=0 // pred_fallthru
    _

// kernel: cnn_encoder2_forward.43
$region0: #{cnn_encoder2_forward.43}
  #allocation0 [shape = 'u32[]', space=smem, size = 0x4, offset = 0x4, fixed_abs, tag = 'smem constant byte address 0x4 - core index']
  #allocation1 [shape = 'u32[144,128]{1,0:T(1,128)}', space=vmem, size = 0x12000, scoped, tag = 'internal scratch']
  %s0 = inlined_call_operand.vmem [shape: bf16[32,8], index: 0, kind: input, shape index: {}]
  %s1 = inlined_call_operand.vmem [shape: bf16[8,128], index: 1, kind: input, shape index: {}]
  %s2 = inlined_call_operand.vmem [shape: f32[32,1], index: 2, kind: input, shape index: {}]
  %s3 = inlined_call_operand.vmem [shape: bf16[32,128], index: 3, kind: input, shape index: {}]
  %s4 = inlined_call_operand.vmem [shape: bf16[32,128], index: 4, kind: output, shape index: {}]
  %s5 = sld [smem:[#allocation0]]
  $region26: #{cnn_encoder2_forward.43} parent=0
    _
  %s7 = ssub.s32 1, %s5
  %s8 = scalar_select 0, %s7, %s5
  // Predicated region
  $region2: #{cnn_encoder2_forward.43} parent=0 // pred_check
    _
  $region3: #{cnn_encoder2_forward.43} parent=0 // pred_check_branch
    %10 = sbr.rel (0) target = $region5
  $region4: #{cnn_encoder2_forward.43} parent=0 // pred_region
    _
  $region5: #{cnn_encoder2_forward.43} parent=0 // pred_fallthru
    _
  // Predicated region
  $region6: #{cnn_encoder2_forward.43} parent=0 // pred_check
    _
  $region7: #{cnn_encoder2_forward.43} parent=0 // pred_check_branch
    %12 = sbr.rel (0) target = $region9
  $region8: #{cnn_encoder2_forward.43} parent=0 // pred_region
    _
  $region9: #{cnn_encoder2_forward.43} parent=0 // pred_fallthru
    _
  // Predicated region
  $region10: #{cnn_encoder2_forward.43} parent=0 // pred_check
    _
  $region11: #{cnn_encoder2_forward.43} parent=0 // pred_check_branch
    %14 = sbr.rel (0) target = $region13
  $region12: #{cnn_encoder2_forward.43} parent=0 // pred_region
    _
  $region13: #{cnn_encoder2_forward.43} parent=0 // pred_fallthru
    _
  // Predicated region
  $region14: #{cnn_encoder2_forward.43} parent=0 // pred_check
    _
  $region15: #{cnn_encoder2_forward.43} parent=0 // pred_check_branch
    %16 = sbr.rel (0) target = $region17
  $region16: #{cnn_encoder2_forward.43} parent=0 // pred_region
    _
  $region17: #{cnn_encoder2_forward.43} parent=0 // pred_fallthru
    _
  %v18 = vld [vmem:[%s0] sm:$0xf]
  %v19 = vld [vmem:[%s0 + $0x4] sm:$0xf]
  %v20 = vld [vmem:[%s0 + $0x8] sm:$0xf]
  %v21 = vld [vmem:[%s0 + $0xc] sm:$0xf]
  %v22 = vld [vmem:[%s1] sm:$0xf]
  %v23 = vld [vmem:[%s2] sm:$0xff]
  %v24 = vld [vmem:[%s2 + $0x8] sm:$0xff]
  %v25 = vld [vmem:[%s2 + $0x10] sm:$0xff]
  %v26 = vld [vmem:[%s2 + $0x18] sm:$0xff]
  %28 = vset.pattern.permute.xlu0 0
  %29 = vperm.xlu0 %28, %v23
  %v30 = vpop.permute.xlu0 %29
  %33 = vset.pattern.permute.xlu0 0
  %34 = vperm.xlu0 %33, %v24
  %v35 = vpop.permute.xlu0 %34
  %38 = vset.pattern.permute.xlu0 0
  %39 = vperm.xlu0 %38, %v25
  %v40 = vpop.permute.xlu0 %39
  %43 = vset.pattern.permute.xlu0 0
  %44 = vperm.xlu0 %43, %v26
  %v45 = vpop.permute.xlu0 %44
  %v51 = vunpack.c.l.b16 %v18
  %v52 = vunpack.c.l.b16 %v19
  %v53 = vunpack.c.l.b16 %v20
  %v54 = vunpack.c.l.b16 %v21
  %v55 = vpack.c.b16 %v52, %v51
  %v56 = vpack.c.b16 %v54, %v53
  %vm57 = vcmask 64512
  %v59 = vsel %vm57, %v55, 0
  %v62 = vsel %vm57, %v56, 0
  %vm64 = vcmask 1043456
  %v66 = vsel %vm64, %v22, 0
  %68 = vmatprep.subr.bf16.mxu0 0
  %69 = vmatpush1.bf16.msra.mxu0 %v66
  %70 = vmatprep.subr.bf16.mxu0 0
  %71 = vmatpush1.bf16.msra.mxu0 0
  %72 = vmatprep.subr.bf16.mxu0 0
  %73 = vmatpush1.bf16.msra.mxu0 0
  %74 = vmatprep.subr.bf16.mxu0 0
  %75 = vmatpush1.bf16.msra.mxu0 0
  %76 = vmatprep.subr.bf16.mxu0 0
  %77 = vmatpush1.bf16.msra.mxu0 0
  %78 = vmatprep.subr.bf16.mxu0 0
  %79 = vmatpush1.bf16.msra.mxu0 0
  %80 = vmatprep.subr.bf16.mxu0 0
  %81 = vmatpush1.bf16.msra.mxu0 0
  %82 = vmatprep.subr.bf16.mxu0 0
  %83 = vmatpush1.bf16.msra.mxu0 0
  %84 = vmatprep.subr.bf16.mxu0 0
  %85 = vmatpush1.bf16.msra.mxu0 0
  %86 = vmatprep.subr.bf16.mxu0 0
  %87 = vmatpush1.bf16.msra.mxu0 0
  %88 = vmatprep.subr.bf16.mxu0 0
  %89 = vmatpush1.bf16.msra.mxu0 0
  %90 = vmatprep.subr.bf16.mxu0 0
  %91 = vmatpush1.bf16.msra.mxu0 0
  %92 = vmatprep.subr.bf16.mxu0 0
  %93 = vmatpush1.bf16.msra.mxu0 0
  %94 = vmatprep.subr.bf16.mxu0 0
  %95 = vmatpush1.bf16.msra.mxu0 0
  %96 = vmatprep.subr.bf16.mxu0 0
  %97 = vmatpush1.bf16.msra.mxu0 0
  %98 = vmatprep.subr.bf16.mxu0 0
  %99 = vmatpush1.bf16.msra.mxu0 0
  %100 = vmatprep.mubr.bf16.mxu0 0
  %101 = vmatmul.mubr.bf16.gmra.mrb[0].mxu0 %v59
  %v102 = vpop.f32.mrb[0].mxu0
  %v103 = vadd.f32 %v30, %v102
  %v104 = vpop.f32.mrb[0].mxu0
  %v105 = vpop.f32.mrb[0].mxu0
  %v106 = vadd.f32 %v35, %v105
  %v107 = vpop.f32.mrb[0].mxu0
  %108 = vmatprep.mubr.bf16.mxu0 0
  %109 = vmatmul.mubr.bf16.gmra.mrb[0].mxu0 %v62
  %v110 = vpop.f32.mrb[0].mxu0
  %v111 = vadd.f32 %v40, %v110
  %v112 = vpop.f32.mrb[0].mxu0
  %v113 = vpop.f32.mrb[0].mxu0
  %v114 = vadd.f32 %v45, %v113
  %v115 = vpop.f32.mrb[0].mxu0
  %116 = vdwg.mxu0
  %v117 = vld [vmem:[%s3] sm:$0xf]
  %v118 = vld [vmem:[%s3 + $0x4] sm:$0xf]
  %v119 = vld [vmem:[%s3 + $0x8] sm:$0xf]
  %v120 = vld [vmem:[%s3 + $0xc] sm:$0xf]
  %v121 = vunpack.c.l.bf16 %v117
  %v122 = vunpack.c.l.bf16 %v118
  %v123 = vunpack.c.l.bf16 %v119
  %v124 = vunpack.c.l.bf16 %v120
  %v125 = vadd.f32 %v103, %v121
  %v126 = vadd.f32 %v106, %v122
  %v127 = vadd.f32 %v111, %v123
  %v128 = vadd.f32 %v114, %v124
  %v129 = vmax.f32 %v125, 0.0
  %v130 = vmax.f32 %v126, 0.0
  %v131 = vmax.f32 %v127, 0.0
  %v132 = vmax.f32 %v128, 0.0
  %v133 = vpack.c.bf16 %v130, %v129
  %v134 = vpack.c.bf16 %v132, %v131
  %v137 = vunpack.c.l.b16 %v133
  %v138 = vunpack.c.h.b16 %v133
  %v139 = vunpack.c.l.b16 %v134
  %v140 = vunpack.c.h.b16 %v134
  %v141 = vpack.c.b16 %v137, %v137
  %v142 = vpack.c.b16 %v138, %v138
  %v143 = vpack.c.b16 %v139, %v139
  %v144 = vpack.c.b16 %v140, %v140
  %149 = vst [vmem:[%s4] sm:$0xf] %v141
  %150 = vst [vmem:[%s4 + $0x4] sm:$0xf] %v142
  %151 = vst [vmem:[%s4 + $0x8] sm:$0xf] %v143
  %152 = vst [vmem:[%s4 + $0xc] sm:$0xf] %v144
  // Predicated region
  $region18: #{cnn_encoder2_forward.43} parent=0 // pred_check
    _
  $region19: #{cnn_encoder2_forward.43} parent=0 // pred_check_branch
    %154 = sbr.rel (0) target = $region21
  $region20: #{cnn_encoder2_forward.43} parent=0 // pred_region
    _
  $region21: #{cnn_encoder2_forward.43} parent=0 // pred_fallthru
    _
  // Predicated region
  $region22: #{cnn_encoder2_forward.43} parent=0 // pred_check
    _
  $region23: #{cnn_encoder2_forward.43} parent=0 // pred_check_branch
    %156 = sbr.rel (0) target = $region25
  $region24: #{cnn_encoder2_forward.43} parent=0 // pred_region
    _
  $region25: #{cnn_encoder2_forward.43} parent=0 // pred_fallthru
    _

// kernel: cnn_encoder2_forward.44
$region0: #{cnn_encoder2_forward.44}
  #allocation0 [shape = 'u32[]', space=smem, size = 0x4, offset = 0x4, fixed_abs, tag = 'smem constant byte address 0x4 - core index']
  #allocation1 [shape = 'u32[144,128]{1,0:T(1,128)}', space=vmem, size = 0x12000, scoped, tag = 'internal scratch']
  %s0 = inlined_call_operand.vmem [shape: bf16[8,32], index: 0, kind: input, shape index: {}]
  %s1 = inlined_call_operand.vmem [shape: bf16[32,128], index: 1, kind: input, shape index: {}]
  %s2 = inlined_call_operand.vmem [shape: f32[8,1], index: 2, kind: input, shape index: {}]
  %s3 = inlined_call_operand.vmem [shape: bf16[8,128], index: 3, kind: output, shape index: {}]
  %s4 = sld [smem:[#allocation0]]
  $region22: #{cnn_encoder2_forward.44} parent=0
    _
  %s6 = ssub.s32 1, %s4
  %s7 = scalar_select 0, %s6, %s4
  // Predicated region
  $region2: #{cnn_encoder2_forward.44} parent=0 // pred_check
    _
  $region3: #{cnn_encoder2_forward.44} parent=0 // pred_check_branch
    %9 = sbr.rel (0) target = $region5
  $region4: #{cnn_encoder2_forward.44} parent=0 // pred_region
    _
  $region5: #{cnn_encoder2_forward.44} parent=0 // pred_fallthru
    _
  // Predicated region
  $region6: #{cnn_encoder2_forward.44} parent=0 // pred_check
    _
  $region7: #{cnn_encoder2_forward.44} parent=0 // pred_check_branch
    %11 = sbr.rel (0) target = $region9
  $region8: #{cnn_encoder2_forward.44} parent=0 // pred_region
    _
  $region9: #{cnn_encoder2_forward.44} parent=0 // pred_fallthru
    _
  // Predicated region
  $region10: #{cnn_encoder2_forward.44} parent=0 // pred_check
    _
  $region11: #{cnn_encoder2_forward.44} parent=0 // pred_check_branch
    %13 = sbr.rel (0) target = $region13
  $region12: #{cnn_encoder2_forward.44} parent=0 // pred_region
    _
  $region13: #{cnn_encoder2_forward.44} parent=0 // pred_fallthru
    _
  %v15 = vld [vmem:[%s0] sm:$0xf]
  %v16 = vld [vmem:[%s1] sm:$0xf]
  %v17 = vld [vmem:[%s1 + $0x4] sm:$0xf]
  %v18 = vld [vmem:[%s1 + $0x8] sm:$0xf]
  %v19 = vld [vmem:[%s1 + $0xc] sm:$0xf]
  %v20 = vld [vmem:[%s2] sm:$0xff]
  %22 = vset.pattern.permute.xlu0 0
  %23 = vperm.xlu0 %22, %v20
  %v24 = vpop.permute.xlu0 %23
  %v30 = vunpack.c.l.b16 %v16
  %v31 = vunpack.c.l.b16 %v17
  %v32 = vunpack.c.l.b16 %v18
  %v33 = vunpack.c.l.b16 %v19
  %v34 = vpack.c.b16 %v31, %v30
  %v35 = vpack.c.b16 %v33, %v32
  %vm38 = vcmask 261120
  %v40 = vsel %vm38, %v15, 0
  %42 = vmatprep.subr.bf16.mxu0 0
  %43 = vmatpush1.bf16.msra.mxu0 %v34
  %44 = vmatprep.subr.bf16.mxu0 0
  %45 = vmatpush1.bf16.msra.mxu0 %v35
  %46 = vmatprep.subr.bf16.mxu0 0
  %47 = vmatpush1.bf16.msra.mxu0 0
  %48 = vmatprep.subr.bf16.mxu0 0
  %49 = vmatpush1.bf16.msra.mxu0 0
  %50 = vmatprep.subr.bf16.mxu0 0
  %51 = vmatpush1.bf16.msra.mxu0 0
  %52 = vmatprep.subr.bf16.mxu0 0
  %53 = vmatpush1.bf16.msra.mxu0 0
  %54 = vmatprep.subr.bf16.mxu0 0
  %55 = vmatpush1.bf16.msra.mxu0 0
  %56 = vmatprep.subr.bf16.mxu0 0
  %57 = vmatpush1.bf16.msra.mxu0 0
  %58 = vmatprep.subr.bf16.mxu0 0
  %59 = vmatpush1.bf16.msra.mxu0 0
  %60 = vmatprep.subr.bf16.mxu0 0
  %61 = vmatpush1.bf16.msra.mxu0 0
  %62 = vmatprep.subr.bf16.mxu0 0
  %63 = vmatpush1.bf16.msra.mxu0 0
  %64 = vmatprep.subr.bf16.mxu0 0
  %65 = vmatpush1.bf16.msra.mxu0 0
  %66 = vmatprep.subr.bf16.mxu0 0
  %67 = vmatpush1.bf16.msra.mxu0 0
  %68 = vmatprep.subr.bf16.mxu0 0
  %69 = vmatpush1.bf16.msra.mxu0 0
  %70 = vmatprep.subr.bf16.mxu0 0
  %71 = vmatpush1.bf16.msra.mxu0 0
  %72 = vmatprep.subr.bf16.mxu0 0
  %73 = vmatpush1.bf16.msra.mxu0 0
  %74 = vmatprep.mubr.bf16.mxu0 0
  %75 = vmatmul.mubr.bf16.gmra.mrb[0].mxu0 %v40
  %v76 = vpop.f32.mrb[0].mxu0
  %v77 = vadd.f32 %v24, %v76
  %v78 = vpop.f32.mrb[0].mxu0
  %v79 = vpop.f32.mrb[0].mxu0
  %v80 = vpop.f32.mrb[0].mxu0
  %81 = vdwg.mxu0
  %v82 = vmax.f32 %v77, 0.0
  %v83 = vpack.c.bf16 %v82, %v82
  %84 = vst [vmem:[%s3] sm:$0xf] %v83
  // Predicated region
  $region14: #{cnn_encoder2_forward.44} parent=0 // pred_check
    _
  $region15: #{cnn_encoder2_forward.44} parent=0 // pred_check_branch
    %86 = sbr.rel (0) target = $region17
  $region16: #{cnn_encoder2_forward.44} parent=0 // pred_region
    _
  $region17: #{cnn_encoder2_forward.44} parent=0 // pred_fallthru
    _
  // Predicated region
  $region18: #{cnn_encoder2_forward.44} parent=0 // pred_check
    _
  $region19: #{cnn_encoder2_forward.44} parent=0 // pred_check_branch
    %88 = sbr.rel (0) target = $region21
  $region20: #{cnn_encoder2_forward.44} parent=0 // pred_region
    _
  $region21: #{cnn_encoder2_forward.44} parent=0 // pred_fallthru
    _

// kernel: cnn_encoder2_forward.50
$region0: #{cnn_encoder2_forward.50}
  #allocation0 [shape = 'u32[]', space=smem, size = 0x4, offset = 0x4, fixed_abs, tag = 'smem constant byte address 0x4 - core index']
  #allocation1 [shape = 'u32[144,128]{1,0:T(1,128)}', space=vmem, size = 0x12000, scoped, tag = 'internal scratch']
  %s0 = inlined_call_operand.vmem [shape: bf16[16,32], index: 0, kind: input, shape index: {}]
  %s1 = inlined_call_operand.vmem [shape: bf16[32,128], index: 1, kind: input, shape index: {}]
  %s2 = inlined_call_operand.vmem [shape: f32[16,1], index: 2, kind: input, shape index: {}]
  %s3 = inlined_call_operand.vmem [shape: bf16[16,128], index: 3, kind: output, shape index: {}]
  %s4 = sld [smem:[#allocation0]]
  $region22: #{cnn_encoder2_forward.50} parent=0
    _
  %s6 = ssub.s32 1, %s4
  %s7 = scalar_select 0, %s6, %s4
  // Predicated region
  $region2: #{cnn_encoder2_forward.50} parent=0 // pred_check
    _
  $region3: #{cnn_encoder2_forward.50} parent=0 // pred_check_branch
    %9 = sbr.rel (0) target = $region5
  $region4: #{cnn_encoder2_forward.50} parent=0 // pred_region
    _
  $region5: #{cnn_encoder2_forward.50} parent=0 // pred_fallthru
    _
  // Predicated region
  $region6: #{cnn_encoder2_forward.50} parent=0 // pred_check
    _
  $region7: #{cnn_encoder2_forward.50} parent=0 // pred_check_branch
    %11 = sbr.rel (0) target = $region9
  $region8: #{cnn_encoder2_forward.50} parent=0 // pred_region
    _
  $region9: #{cnn_encoder2_forward.50} parent=0 // pred_fallthru
    _
  // Predicated region
  $region10: #{cnn_encoder2_forward.50} parent=0 // pred_check
    _
  $region11: #{cnn_encoder2_forward.50} parent=0 // pred_check_branch
    %13 = sbr.rel (0) target = $region13
  $region12: #{cnn_encoder2_forward.50} parent=0 // pred_region
    _
  $region13: #{cnn_encoder2_forward.50} parent=0 // pred_fallthru
    _
  %v15 = vld [vmem:[%s0] sm:$0xf]
  %v16 = vld [vmem:[%s0 + $0x4] sm:$0xf]
  %v17 = vld [vmem:[%s1] sm:$0xf]
  %v18 = vld [vmem:[%s1 + $0x4] sm:$0xf]
  %v19 = vld [vmem:[%s1 + $0x8] sm:$0xf]
  %v20 = vld [vmem:[%s1 + $0xc] sm:$0xf]
  %v21 = vld [vmem:[%s2] sm:$0xff]
  %v22 = vld [vmem:[%s2 + $0x8] sm:$0xff]
  %24 = vset.pattern.permute.xlu0 0
  %25 = vperm.xlu0 %24, %v21
  %v26 = vpop.permute.xlu0 %25
  %29 = vset.pattern.permute.xlu0 0
  %30 = vperm.xlu0 %29, %v22
  %v31 = vpop.permute.xlu0 %30
  %v35 = vunpack.c.l.b16 %v15
  %v36 = vunpack.c.l.b16 %v16
  %v37 = vpack.c.b16 %v36, %v35
  %v42 = vunpack.c.l.b16 %v17
  %v43 = vunpack.c.l.b16 %v18
  %v44 = vunpack.c.l.b16 %v19
  %v45 = vunpack.c.l.b16 %v20
  %v46 = vpack.c.b16 %v43, %v42
  %v47 = vpack.c.b16 %v45, %v44
  %vm50 = vcmask 261120
  %v52 = vsel %vm50, %v37, 0
  %54 = vmatprep.subr.bf16.mxu0 0
  %55 = vmatpush1.bf16.msra.mxu0 %v46
  %56 = vmatprep.subr.bf16.mxu0 0
  %57 = vmatpush1.bf16.msra.mxu0 %v47
  %58 = vmatprep.subr.bf16.mxu0 0
  %59 = vmatpush1.bf16.msra.mxu0 0
  %60 = vmatprep.subr.bf16.mxu0 0
  %61 = vmatpush1.bf16.msra.mxu0 0
  %62 = vmatprep.subr.bf16.mxu0 0
  %63 = vmatpush1.bf16.msra.mxu0 0
  %64 = vmatprep.subr.bf16.mxu0 0
  %65 = vmatpush1.bf16.msra.mxu0 0
  %66 = vmatprep.subr.bf16.mxu0 0
  %67 = vmatpush1.bf16.msra.mxu0 0
  %68 = vmatprep.subr.bf16.mxu0 0
  %69 = vmatpush1.bf16.msra.mxu0 0
  %70 = vmatprep.subr.bf16.mxu0 0
  %71 = vmatpush1.bf16.msra.mxu0 0
  %72 = vmatprep.subr.bf16.mxu0 0
  %73 = vmatpush1.bf16.msra.mxu0 0
  %74 = vmatprep.subr.bf16.mxu0 0
  %75 = vmatpush1.bf16.msra.mxu0 0
  %76 = vmatprep.subr.bf16.mxu0 0
  %77 = vmatpush1.bf16.msra.mxu0 0
  %78 = vmatprep.subr.bf16.mxu0 0
  %79 = vmatpush1.bf16.msra.mxu0 0
  %80 = vmatprep.subr.bf16.mxu0 0
  %81 = vmatpush1.bf16.msra.mxu0 0
  %82 = vmatprep.subr.bf16.mxu0 0
  %83 = vmatpush1.bf16.msra.mxu0 0
  %84 = vmatprep.subr.bf16.mxu0 0
  %85 = vmatpush1.bf16.msra.mxu0 0
  %86 = vmatprep.mubr.bf16.mxu0 0
  %87 = vmatmul.mubr.bf16.gmra.mrb[0].mxu0 %v52
  %v88 = vpop.f32.mrb[0].mxu0
  %v89 = vadd.f32 %v26, %v88
  %v90 = vpop.f32.mrb[0].mxu0
  %v91 = vpop.f32.mrb[0].mxu0
  %v92 = vadd.f32 %v31, %v91
  %v93 = vpop.f32.mrb[0].mxu0
  %94 = vdwg.mxu0
  %v95 = vmax.f32 %v89, 0.0
  %v96 = vmax.f32 %v92, 0.0
  %v97 = vpack.c.bf16 %v96, %v95
  %v99 = vunpack.c.l.b16 %v97
  %v100 = vunpack.c.h.b16 %v97
  %v101 = vpack.c.b16 %v99, %v99
  %v102 = vpack.c.b16 %v100, %v100
  %105 = vst [vmem:[%s3] sm:$0xf] %v101
  %106 = vst [vmem:[%s3 + $0x4] sm:$0xf] %v102
  // Predicated region
  $region14: #{cnn_encoder2_forward.50} parent=0 // pred_check
    _
  $region15: #{cnn_encoder2_forward.50} parent=0 // pred_check_branch
    %108 = sbr.rel (0) target = $region17
  $region16: #{cnn_encoder2_forward.50} parent=0 // pred_region
    _
  $region17: #{cnn_encoder2_forward.50} parent=0 // pred_fallthru
    _
  // Predicated region
  $region18: #{cnn_encoder2_forward.50} parent=0 // pred_check
    _
  $region19: #{cnn_encoder2_forward.50} parent=0 // pred_check_branch
    %110 = sbr.rel (0) target = $region21
  $region20: #{cnn_encoder2_forward.50} parent=0 // pred_region
    _
  $region21: #{cnn_encoder2_forward.50} parent=0 // pred_fallthru
    _

// kernel: cnn_encoder2_forward.51
$region0: #{cnn_encoder2_forward.51}
  #allocation0 [shape = 'u32[]', space=smem, size = 0x4, offset = 0x4, fixed_abs, tag = 'smem constant byte address 0x4 - core index']
  #allocation1 [shape = 'u32[144,128]{1,0:T(1,128)}', space=vmem, size = 0x12000, scoped, tag = 'internal scratch']
  %s0 = inlined_call_operand.vmem [shape: bf16[16,144], index: 0, kind: input, shape index: {}]
  %s1 = inlined_call_operand.vmem [shape: bf16[144,128], index: 1, kind: input, shape index: {}]
  %s2 = inlined_call_operand.vmem [shape: f32[16,1], index: 2, kind: input, shape index: {}]
  %s3 = inlined_call_operand.vmem [shape: bf16[16,128], index: 3, kind: output, shape index: {}]
  %s4 = sld [smem:[#allocation0]]
  $region22: #{cnn_encoder2_forward.51} parent=0
    _
  %s6 = ssub.s32 1, %s4
  %s7 = scalar_select 0, %s6, %s4
  // Predicated region
  $region2: #{cnn_encoder2_forward.51} parent=0 // pred_check
    _
  $region3: #{cnn_encoder2_forward.51} parent=0 // pred_check_branch
    %9 = sbr.rel (0) target = $region5
  $region4: #{cnn_encoder2_forward.51} parent=0 // pred_region
    _
  $region5: #{cnn_encoder2_forward.51} parent=0 // pred_fallthru
    _
  // Predicated region
  $region6: #{cnn_encoder2_forward.51} parent=0 // pred_check
    _
  $region7: #{cnn_encoder2_forward.51} parent=0 // pred_check_branch
    %11 = sbr.rel (0) target = $region9
  $region8: #{cnn_encoder2_forward.51} parent=0 // pred_region
    _
  $region9: #{cnn_encoder2_forward.51} parent=0 // pred_fallthru
    _
  // Predicated region
  $region10: #{cnn_encoder2_forward.51} parent=0 // pred_check
    _
  $region11: #{cnn_encoder2_forward.51} parent=0 // pred_check_branch
    %13 = sbr.rel (0) target = $region13
  $region12: #{cnn_encoder2_forward.51} parent=0 // pred_region
    _
  $region13: #{cnn_encoder2_forward.51} parent=0 // pred_fallthru
    _
  %v15 = vld [vmem:[%s0] sm:$0xff]
  %v16 = vld [vmem:[%s0 + $0x8] sm:$0xff]
  %v17 = vld [vmem:[%s1] sm:$0xf]
  %v18 = vld [vmem:[%s1 + $0x4] sm:$0xf]
  %v19 = vld [vmem:[%s1 + $0x8] sm:$0xf]
  %v20 = vld [vmem:[%s1 + $0xc] sm:$0xf]
  %v21 = vld [vmem:[%s1 + $0x10] sm:$0xf]
  %v22 = vld [vmem:[%s1 + $0x14] sm:$0xf]
  %v23 = vld [vmem:[%s1 + $0x18] sm:$0xf]
  %v24 = vld [vmem:[%s1 + $0x1c] sm:$0xf]
  %v25 = vld [vmem:[%s1 + $0x20] sm:$0xf]
  %v26 = vld [vmem:[%s1 + $0x24] sm:$0xf]
  %v27 = vld [vmem:[%s1 + $0x28] sm:$0xf]
  %v28 = vld [vmem:[%s1 + $0x2c] sm:$0xf]
  %v29 = vld [vmem:[%s1 + $0x30] sm:$0xf]
  %v30 = vld [vmem:[%s1 + $0x34] sm:$0xf]
  %v31 = vld [vmem:[%s1 + $0x38] sm:$0xf]
  %v32 = vld [vmem:[%s1 + $0x3c] sm:$0xf]
  %v33 = vld [vmem:[%s1 + $0x40] sm:$0xf]
  %v34 = vld [vmem:[%s1 + $0x44] sm:$0xf]
  %v35 = vld [vmem:[%s2] sm:$0xff]
  %v36 = vld [vmem:[%s2 + $0x8] sm:$0xff]
  %38 = vset.pattern.permute.xlu0 0
  %39 = vperm.xlu0 %38, %v35
  %v40 = vpop.permute.xlu0 %39
  %43 = vset.pattern.permute.xlu0 0
  %44 = vperm.xlu0 %43, %v36
  %v45 = vpop.permute.xlu0 %44
  %v49 = vunpack.c.l.b16 %v15
  %v50 = vunpack.c.h.b16 %v15
  %v51 = vunpack.c.l.b16 %v16
  %v52 = vunpack.c.h.b16 %v16
  %v53 = vpack.c.b16 %v51, %v49
  %v54 = vpack.c.b16 %v52, %v50
  %v74 = vunpack.c.l.b16 %v17
  %v75 = vunpack.c.l.b16 %v18
  %v76 = vunpack.c.l.b16 %v19
  %v77 = vunpack.c.l.b16 %v20
  %v78 = vunpack.c.l.b16 %v21
  %v79 = vunpack.c.l.b16 %v22
  %v80 = vunpack.c.l.b16 %v23
  %v81 = vunpack.c.l.b16 %v24
  %v82 = vunpack.c.l.b16 %v25
  %v83 = vunpack.c.l.b16 %v26
  %v84 = vunpack.c.l.b16 %v27
  %v85 = vunpack.c.l.b16 %v28
  %v86 = vunpack.c.l.b16 %v29
  %v87 = vunpack.c.l.b16 %v30
  %v88 = vunpack.c.l.b16 %v31
  %v89 = vunpack.c.l.b16 %v32
  %v90 = vunpack.c.l.b16 %v33
  %v91 = vunpack.c.l.b16 %v34
  %v92 = vpack.c.b16 %v75, %v74
  %v93 = vpack.c.b16 %v77, %v76
  %v94 = vpack.c.b16 %v79, %v78
  %v95 = vpack.c.b16 %v81, %v80
  %v96 = vpack.c.b16 %v83, %v82
  %v97 = vpack.c.b16 %v85, %v84
  %v98 = vpack.c.b16 %v87, %v86
  %v99 = vpack.c.b16 %v89, %v88
  %v100 = vpack.c.b16 %v91, %v90
  %vm110 = vcmask 130048
  %v112 = vsel %vm110, %v54, 0
  %114 = vmatprep.subr.bf16.mxu0 0
  %115 = vmatpush1.bf16.msra.mxu0 %v92
  %116 = vmatprep.subr.bf16.mxu0 0
  %117 = vmatpush1.bf16.msra.mxu0 %v93
  %118 = vmatprep.subr.bf16.mxu0 0
  %119 = vmatpush1.bf16.msra.mxu0 %v94
  %120 = vmatprep.subr.bf16.mxu0 0
  %121 = vmatpush1.bf16.msra.mxu0 %v95
  %122 = vmatprep.subr.bf16.mxu0 0
  %123 = vmatpush1.bf16.msra.mxu0 %v96
  %124 = vmatprep.subr.bf16.mxu0 0
  %125 = vmatpush1.bf16.msra.mxu0 %v97
  %126 = vmatprep.subr.bf16.mxu0 0
  %127 = vmatpush1.bf16.msra.mxu0 %v98
  %128 = vmatprep.subr.bf16.mxu0 0
  %129 = vmatpush1.bf16.msra.mxu0 %v99
  %130 = vmatprep.subr.bf16.mxu0 0
  %131 = vmatpush1.bf16.msra.mxu0 %v100
  %132 = vmatprep.subr.bf16.mxu0 0
  %133 = vmatpush1.bf16.msra.mxu0 0
  %134 = vmatprep.subr.bf16.mxu0 0
  %135 = vmatpush1.bf16.msra.mxu0 0
  %136 = vmatprep.subr.bf16.mxu0 0
  %137 = vmatpush1.bf16.msra.mxu0 0
  %138 = vmatprep.subr.bf16.mxu0 0
  %139 = vmatpush1.bf16.msra.mxu0 0
  %140 = vmatprep.subr.bf16.mxu0 0
  %141 = vmatpush1.bf16.msra.mxu0 0
  %142 = vmatprep.subr.bf16.mxu0 0
  %143 = vmatpush1.bf16.msra.mxu0 0
  %144 = vmatprep.subr.bf16.mxu0 0
  %145 = vmatpush1.bf16.msra.mxu0 0
  %146 = vmatprep.mubr.bf16.mxu0 %v112
  %147 = vmatmul.mubr.bf16.gmra.mrb[0].mxu0 %v53
  %v148 = vpop.f32.mrb[0].mxu0
  %v149 = vadd.f32 %v40, %v148
  %v150 = vpop.f32.mrb[0].mxu0
  %v151 = vpop.f32.mrb[0].mxu0
  %v152 = vadd.f32 %v45, %v151
  %v153 = vpop.f32.mrb[0].mxu0
  %154 = vdwg.mxu0
  %v155 = vmax.f32 %v149, 0.0
  %v156 = vmax.f32 %v152, 0.0
  %v157 = vpack.c.bf16 %v156, %v155
  %v159 = vunpack.c.l.b16 %v157
  %v160 = vunpack.c.h.b16 %v157
  %v161 = vpack.c.b16 %v159, %v159
  %v162 = vpack.c.b16 %v160, %v160
  %165 = vst [vmem:[%s3] sm:$0xf] %v161
  %166 = vst [vmem:[%s3 + $0x4] sm:$0xf] %v162
  // Predicated region
  $region14: #{cnn_encoder2_forward.51} parent=0 // pred_check
    _
  $region15: #{cnn_encoder2_forward.51} parent=0 // pred_check_branch
    %168 = sbr.rel (0) target = $region17
  $region16: #{cnn_encoder2_forward.51} parent=0 // pred_region
    _
  $region17: #{cnn_encoder2_forward.51} parent=0 // pred_fallthru
    _
  // Predicated region
  $region18: #{cnn_encoder2_forward.51} parent=0 // pred_check
    _
  $region19: #{cnn_encoder2_forward.51} parent=0 // pred_check_branch
    %170 = sbr.rel (0) target = $region21
  $region20: #{cnn_encoder2_forward.51} parent=0 // pred_region
    _
  $region21: #{cnn_encoder2_forward.51} parent=0 // pred_fallthru
    _

// kernel: cnn_encoder2_forward.52
$region0: #{cnn_encoder2_forward.52}
  #allocation0 [shape = 'u32[]', space=smem, size = 0x4, offset = 0x4, fixed_abs, tag = 'smem constant byte address 0x4 - core index']
  #allocation1 [shape = 'u32[144,128]{1,0:T(1,128)}', space=vmem, size = 0x12000, scoped, tag = 'internal scratch']
  %s0 = inlined_call_operand.vmem [shape: bf16[64,32], index: 0, kind: input, shape index: {}]
  %s1 = inlined_call_operand.vmem [shape: bf16[32,128], index: 1, kind: input, shape index: {}]
  %s2 = inlined_call_operand.vmem [shape: f32[64,1], index: 2, kind: input, shape index: {}]
  %s3 = inlined_call_operand.vmem [shape: bf16[64,128], index: 3, kind: output, shape index: {}]
  %s4 = sld [smem:[#allocation0]]
  $region22: #{cnn_encoder2_forward.52} parent=0
    _
  %s6 = ssub.s32 1, %s4
  %s7 = scalar_select 0, %s6, %s4
  // Predicated region
  $region2: #{cnn_encoder2_forward.52} parent=0 // pred_check
    _
  $region3: #{cnn_encoder2_forward.52} parent=0 // pred_check_branch
    %9 = sbr.rel (0) target = $region5
  $region4: #{cnn_encoder2_forward.52} parent=0 // pred_region
    _
  $region5: #{cnn_encoder2_forward.52} parent=0 // pred_fallthru
    _
  // Predicated region
  $region6: #{cnn_encoder2_forward.52} parent=0 // pred_check
    _
  $region7: #{cnn_encoder2_forward.52} parent=0 // pred_check_branch
    %11 = sbr.rel (0) target = $region9
  $region8: #{cnn_encoder2_forward.52} parent=0 // pred_region
    _
  $region9: #{cnn_encoder2_forward.52} parent=0 // pred_fallthru
    _
  // Predicated region
  $region10: #{cnn_encoder2_forward.52} parent=0 // pred_check
    _
  $region11: #{cnn_encoder2_forward.52} parent=0 // pred_check_branch
    %13 = sbr.rel (0) target = $region13
  $region12: #{cnn_encoder2_forward.52} parent=0 // pred_region
    _
  $region13: #{cnn_encoder2_forward.52} parent=0 // pred_fallthru
    _
  %v15 = vld [vmem:[%s0] sm:$0xf]
  %v16 = vld [vmem:[%s0 + $0x4] sm:$0xf]
  %v17 = vld [vmem:[%s0 + $0x8] sm:$0xf]
  %v18 = vld [vmem:[%s0 + $0xc] sm:$0xf]
  %v19 = vld [vmem:[%s0 + $0x10] sm:$0xf]
  %v20 = vld [vmem:[%s0 + $0x14] sm:$0xf]
  %v21 = vld [vmem:[%s0 + $0x18] sm:$0xf]
  %v22 = vld [vmem:[%s0 + $0x1c] sm:$0xf]
  %v23 = vld [vmem:[%s1] sm:$0xf]
  %v24 = vld [vmem:[%s1 + $0x4] sm:$0xf]
  %v25 = vld [vmem:[%s1 + $0x8] sm:$0xf]
  %v26 = vld [vmem:[%s1 + $0xc] sm:$0xf]
  %v27 = vld [vmem:[%s2] sm:$0xff]
  %v28 = vld [vmem:[%s2 + $0x8] sm:$0xff]
  %v29 = vld [vmem:[%s2 + $0x10] sm:$0xff]
  %v30 = vld [vmem:[%s2 + $0x18] sm:$0xff]
  %v31 = vld [vmem:[%s2 + $0x20] sm:$0xff]
  %v32 = vld [vmem:[%s2 + $0x28] sm:$0xff]
  %v33 = vld [vmem:[%s2 + $0x30] sm:$0xff]
  %v34 = vld [vmem:[%s2 + $0x38] sm:$0xff]
  %36 = vset.pattern.permute.xlu0 0
  %37 = vperm.xlu0 %36, %v27
  %v38 = vpop.permute.xlu0 %37
  %41 = vset.pattern.permute.xlu0 0
  %42 = vperm.xlu0 %41, %v28
  %v43 = vpop.permute.xlu0 %42
  %46 = vset.pattern.permute.xlu0 0
  %47 = vperm.xlu0 %46, %v29
  %v48 = vpop.permute.xlu0 %47
  %51 = vset.pattern.permute.xlu0 0
  %52 = vperm.xlu0 %51, %v30
  %v53 = vpop.permute.xlu0 %52
  %56 = vset.pattern.permute.xlu0 0
  %57 = vperm.xlu0 %56, %v31
  %v58 = vpop.permute.xlu0 %57
  %61 = vset.pattern.permute.xlu0 0
  %62 = vperm.xlu0 %61, %v32
  %v63 = vpop.permute.xlu0 %62
  %66 = vset.pattern.permute.xlu0 0
  %67 = vperm.xlu0 %66, %v33
  %v68 = vpop.permute.xlu0 %67
  %71 = vset.pattern.permute.xlu0 0
  %72 = vperm.xlu0 %71, %v34
  %v73 = vpop.permute.xlu0 %72
  %v83 = vunpack.c.l.b16 %v15
  %v84 = vunpack.c.l.b16 %v16
  %v85 = vunpack.c.l.b16 %v17
  %v86 = vunpack.c.l.b16 %v18
  %v87 = vunpack.c.l.b16 %v19
  %v88 = vunpack.c.l.b16 %v20
  %v89 = vunpack.c.l.b16 %v21
  %v90 = vunpack.c.l.b16 %v22
  %v91 = vpack.c.b16 %v84, %v83
  %v92 = vpack.c.b16 %v86, %v85
  %v93 = vpack.c.b16 %v88, %v87
  %v94 = vpack.c.b16 %v90, %v89
  %v99 = vunpack.c.l.b16 %v23
  %v100 = vunpack.c.l.b16 %v24
  %v101 = vunpack.c.l.b16 %v25
  %v102 = vunpack.c.l.b16 %v26
  %v103 = vpack.c.b16 %v100, %v99
  %v104 = vpack.c.b16 %v102, %v101
  %vm107 = vcmask 261120
  %v109 = vsel %vm107, %v91, 0
  %v112 = vsel %vm107, %v92, 0
  %v115 = vsel %vm107, %v93, 0
  %v118 = vsel %vm107, %v94, 0
  %120 = vmatprep.subr.bf16.mxu0 0
  %121 = vmatpush1.bf16.msra.mxu0 %v103
  %122 = vmatprep.subr.bf16.mxu0 0
  %123 = vmatpush1.bf16.msra.mxu0 %v104
  %124 = vmatprep.subr.bf16.mxu0 0
  %125 = vmatpush1.bf16.msra.mxu0 0
  %126 = vmatprep.subr.bf16.mxu0 0
  %127 = vmatpush1.bf16.msra.mxu0 0
  %128 = vmatprep.subr.bf16.mxu0 0
  %129 = vmatpush1.bf16.msra.mxu0 0
  %130 = vmatprep.subr.bf16.mxu0 0
  %131 = vmatpush1.bf16.msra.mxu0 0
  %132 = vmatprep.subr.bf16.mxu0 0
  %133 = vmatpush1.bf16.msra.mxu0 0
  %134 = vmatprep.subr.bf16.mxu0 0
  %135 = vmatpush1.bf16.msra.mxu0 0
  %136 = vmatprep.subr.bf16.mxu0 0
  %137 = vmatpush1.bf16.msra.mxu0 0
  %138 = vmatprep.subr.bf16.mxu0 0
  %139 = vmatpush1.bf16.msra.mxu0 0
  %140 = vmatprep.subr.bf16.mxu0 0
  %141 = vmatpush1.bf16.msra.mxu0 0
  %142 = vmatprep.subr.bf16.mxu0 0
  %143 = vmatpush1.bf16.msra.mxu0 0
  %144 = vmatprep.subr.bf16.mxu0 0
  %145 = vmatpush1.bf16.msra.mxu0 0
  %146 = vmatprep.subr.bf16.mxu0 0
  %147 = vmatpush1.bf16.msra.mxu0 0
  %148 = vmatprep.subr.bf16.mxu0 0
  %149 = vmatpush1.bf16.msra.mxu0 0
  %150 = vmatprep.subr.bf16.mxu0 0
  %151 = vmatpush1.bf16.msra.mxu0 0
  %152 = vmatprep.mubr.bf16.mxu0 0
  %153 = vmatmul.mubr.bf16.gmra.mrb[0].mxu0 %v109
  %v154 = vpop.f32.mrb[0].mxu0
  %v155 = vadd.f32 %v38, %v154
  %v156 = vpop.f32.mrb[0].mxu0
  %v157 = vpop.f32.mrb[0].mxu0
  %v158 = vadd.f32 %v43, %v157
  %v159 = vpop.f32.mrb[0].mxu0
  %160 = vmatprep.mubr.bf16.mxu0 0
  %161 = vmatmul.mubr.bf16.gmra.mrb[0].mxu0 %v112
  %v162 = vpop.f32.mrb[0].mxu0
  %v163 = vadd.f32 %v48, %v162
  %v164 = vpop.f32.mrb[0].mxu0
  %v165 = vpop.f32.mrb[0].mxu0
  %v166 = vadd.f32 %v53, %v165
  %v167 = vpop.f32.mrb[0].mxu0
  %168 = vmatprep.mubr.bf16.mxu0 0
  %169 = vmatmul.mubr.bf16.gmra.mrb[0].mxu0 %v115
  %v170 = vpop.f32.mrb[0].mxu0
  %v171 = vadd.f32 %v58, %v170
  %v172 = vpop.f32.mrb[0].mxu0
  %v173 = vpop.f32.mrb[0].mxu0
  %v174 = vadd.f32 %v63, %v173
  %v175 = vpop.f32.mrb[0].mxu0
  %176 = vmatprep.mubr.bf16.mxu0 0
  %177 = vmatmul.mubr.bf16.gmra.mrb[0].mxu0 %v118
  %v178 = vpop.f32.mrb[0].mxu0
  %v179 = vadd.f32 %v68, %v178
  %v180 = vpop.f32.mrb[0].mxu0
  %v181 = vpop.f32.mrb[0].mxu0
  %v182 = vadd.f32 %v73, %v181
  %v183 = vpop.f32.mrb[0].mxu0
  %184 = vdwg.mxu0
  %v185 = vpack.c.bf16 %v158, %v155
  %v186 = vpack.c.bf16 %v166, %v163
  %v187 = vpack.c.bf16 %v174, %v171
  %v188 = vpack.c.bf16 %v182, %v179
  %v193 = vunpack.c.l.b16 %v185
  %v194 = vunpack.c.h.b16 %v185
  %v195 = vunpack.c.l.b16 %v186
  %v196 = vunpack.c.h.b16 %v186
  %v197 = vunpack.c.l.b16 %v187
  %v198 = vunpack.c.h.b16 %v187
  %v199 = vunpack.c.l.b16 %v188
  %v200 = vunpack.c.h.b16 %v188
  %v201 = vpack.c.b16 %v193, %v193
  %v202 = vpack.c.b16 %v194, %v194
  %v203 = vpack.c.b16 %v195, %v195
  %v204 = vpack.c.b16 %v196, %v196
  %v205 = vpack.c.b16 %v197, %v197
  %v206 = vpack.c.b16 %v198, %v198
  %v207 = vpack.c.b16 %v199, %v199
  %v208 = vpack.c.b16 %v200, %v200
  %217 = vst [vmem:[%s3] sm:$0xf] %v201
  %218 = vst [vmem:[%s3 + $0x4] sm:$0xf] %v202
  %219 = vst [vmem:[%s3 + $0x8] sm:$0xf] %v203
  %220 = vst [vmem:[%s3 + $0xc] sm:$0xf] %v204
  %221 = vst [vmem:[%s3 + $0x10] sm:$0xf] %v205
  %222 = vst [vmem:[%s3 + $0x14] sm:$0xf] %v206
  %223 = vst [vmem:[%s3 + $0x18] sm:$0xf] %v207
  %224 = vst [vmem:[%s3 + $0x1c] sm:$0xf] %v208
  // Predicated region
  $region14: #{cnn_encoder2_forward.52} parent=0 // pred_check
    _
  $region15: #{cnn_encoder2_forward.52} parent=0 // pred_check_branch
    %226 = sbr.rel (0) target = $region17
  $region16: #{cnn_encoder2_forward.52} parent=0 // pred_region
    _
  $region17: #{cnn_encoder2_forward.52} parent=0 // pred_fallthru
    _
  // Predicated region
  $region18: #{cnn_encoder2_forward.52} parent=0 // pred_check
    _
  $region19: #{cnn_encoder2_forward.52} parent=0 // pred_check_branch
    %228 = sbr.rel (0) target = $region21
  $region20: #{cnn_encoder2_forward.52} parent=0 // pred_region
    _
  $region21: #{cnn_encoder2_forward.52} parent=0 // pred_fallthru
    _

// kernel: cnn_encoder2_forward.54
$region0: #{cnn_encoder2_forward.54}
  #allocation0 [shape = 'u32[]', space=smem, size = 0x4, offset = 0x4, fixed_abs, tag = 'smem constant byte address 0x4 - core index']
  #allocation1 [shape = 'u32[144,128]{1,0:T(1,128)}', space=vmem, size = 0x12000, scoped, tag = 'internal scratch']
  %s0 = inlined_call_operand.vmem [shape: bf16[16,64], index: 0, kind: input, shape index: {}]
  %s1 = inlined_call_operand.vmem [shape: bf16[64,128], index: 1, kind: input, shape index: {}]
  %s2 = inlined_call_operand.vmem [shape: f32[16,1], index: 2, kind: input, shape index: {}]
  %s3 = inlined_call_operand.vmem [shape: bf16[16,128], index: 3, kind: output, shape index: {}]
  %s4 = sld [smem:[#allocation0]]
  $region22: #{cnn_encoder2_forward.54} parent=0
    _
  %s6 = ssub.s32 1, %s4
  %s7 = scalar_select 0, %s6, %s4
  // Predicated region
  $region2: #{cnn_encoder2_forward.54} parent=0 // pred_check
    _
  $region3: #{cnn_encoder2_forward.54} parent=0 // pred_check_branch
    %9 = sbr.rel (0) target = $region5
  $region4: #{cnn_encoder2_forward.54} parent=0 // pred_region
    _
  $region5: #{cnn_encoder2_forward.54} parent=0 // pred_fallthru
    _
  // Predicated region
  $region6: #{cnn_encoder2_forward.54} parent=0 // pred_check
    _
  $region7: #{cnn_encoder2_forward.54} parent=0 // pred_check_branch
    %11 = sbr.rel (0) target = $region9
  $region8: #{cnn_encoder2_forward.54} parent=0 // pred_region
    _
  $region9: #{cnn_encoder2_forward.54} parent=0 // pred_fallthru
    _
  // Predicated region
  $region10: #{cnn_encoder2_forward.54} parent=0 // pred_check
    _
  $region11: #{cnn_encoder2_forward.54} parent=0 // pred_check_branch
    %13 = sbr.rel (0) target = $region13
  $region12: #{cnn_encoder2_forward.54} parent=0 // pred_region
    _
  $region13: #{cnn_encoder2_forward.54} parent=0 // pred_fallthru
    _
  %v15 = vld [vmem:[%s0] sm:$0xf]
  %v16 = vld [vmem:[%s0 + $0x4] sm:$0xf]
  %v17 = vld [vmem:[%s1] sm:$0xf]
  %v18 = vld [vmem:[%s1 + $0x4] sm:$0xf]
  %v19 = vld [vmem:[%s1 + $0x8] sm:$0xf]
  %v20 = vld [vmem:[%s1 + $0xc] sm:$0xf]
  %v21 = vld [vmem:[%s1 + $0x10] sm:$0xf]
  %v22 = vld [vmem:[%s1 + $0x14] sm:$0xf]
  %v23 = vld [vmem:[%s1 + $0x18] sm:$0xf]
  %v24 = vld [vmem:[%s1 + $0x1c] sm:$0xf]
  %v25 = vld [vmem:[%s2] sm:$0xff]
  %v26 = vld [vmem:[%s2 + $0x8] sm:$0xff]
  %28 = vset.pattern.permute.xlu0 0
  %29 = vperm.xlu0 %28, %v25
  %v30 = vpop.permute.xlu0 %29
  %33 = vset.pattern.permute.xlu0 0
  %34 = vperm.xlu0 %33, %v26
  %v35 = vpop.permute.xlu0 %34
  %v39 = vunpack.c.l.b16 %v15
  %v40 = vunpack.c.l.b16 %v16
  %v41 = vpack.c.b16 %v40, %v39
  %v50 = vunpack.c.l.b16 %v17
  %v51 = vunpack.c.l.b16 %v18
  %v52 = vunpack.c.l.b16 %v19
  %v53 = vunpack.c.l.b16 %v20
  %v54 = vunpack.c.l.b16 %v21
  %v55 = vunpack.c.l.b16 %v22
  %v56 = vunpack.c.l.b16 %v23
  %v57 = vunpack.c.l.b16 %v24
  %v58 = vpack.c.b16 %v51, %v50
  %v59 = vpack.c.b16 %v53, %v52
  %v60 = vpack.c.b16 %v55, %v54
  %v61 = vpack.c.b16 %v57, %v56
  %vm66 = vcmask 523264
  %v68 = vsel %vm66, %v41, 0
  %70 = vmatprep.subr.bf16.mxu0 0
  %71 = vmatpush1.bf16.msra.mxu0 %v58
  %72 = vmatprep.subr.bf16.mxu0 0
  %73 = vmatpush1.bf16.msra.mxu0 %v59
  %74 = vmatprep.subr.bf16.mxu0 0
  %75 = vmatpush1.bf16.msra.mxu0 %v60
  %76 = vmatprep.subr.bf16.mxu0 0
  %77 = vmatpush1.bf16.msra.mxu0 %v61
  %78 = vmatprep.subr.bf16.mxu0 0
  %79 = vmatpush1.bf16.msra.mxu0 0
  %80 = vmatprep.subr.bf16.mxu0 0
  %81 = vmatpush1.bf16.msra.mxu0 0
  %82 = vmatprep.subr.bf16.mxu0 0
  %83 = vmatpush1.bf16.msra.mxu0 0
  %84 = vmatprep.subr.bf16.mxu0 0
  %85 = vmatpush1.bf16.msra.mxu0 0
  %86 = vmatprep.subr.bf16.mxu0 0
  %87 = vmatpush1.bf16.msra.mxu0 0
  %88 = vmatprep.subr.bf16.mxu0 0
  %89 = vmatpush1.bf16.msra.mxu0 0
  %90 = vmatprep.subr.bf16.mxu0 0
  %91 = vmatpush1.bf16.msra.mxu0 0
  %92 = vmatprep.subr.bf16.mxu0 0
  %93 = vmatpush1.bf16.msra.mxu0 0
  %94 = vmatprep.subr.bf16.mxu0 0
  %95 = vmatpush1.bf16.msra.mxu0 0
  %96 = vmatprep.subr.bf16.mxu0 0
  %97 = vmatpush1.bf16.msra.mxu0 0
  %98 = vmatprep.subr.bf16.mxu0 0
  %99 = vmatpush1.bf16.msra.mxu0 0
  %100 = vmatprep.subr.bf16.mxu0 0
  %101 = vmatpush1.bf16.msra.mxu0 0
  %102 = vmatprep.mubr.bf16.mxu0 0
  %103 = vmatmul.mubr.bf16.gmra.mrb[0].mxu0 %v68
  %v104 = vpop.f32.mrb[0].mxu0
  %v105 = vadd.f32 %v30, %v104
  %v106 = vpop.f32.mrb[0].mxu0
  %v107 = vpop.f32.mrb[0].mxu0
  %v108 = vadd.f32 %v35, %v107
  %v109 = vpop.f32.mrb[0].mxu0
  %110 = vdwg.mxu0
  %v111 = vmax.f32 %v105, 0.0
  %v112 = vmax.f32 %v108, 0.0
  %v113 = vpack.c.bf16 %v112, %v111
  %v115 = vunpack.c.l.b16 %v113
  %v116 = vunpack.c.h.b16 %v113
  %v117 = vpack.c.b16 %v115, %v115
  %v118 = vpack.c.b16 %v116, %v116
  %121 = vst [vmem:[%s3] sm:$0xf] %v117
  %122 = vst [vmem:[%s3 + $0x4] sm:$0xf] %v118
  // Predicated region
  $region14: #{cnn_encoder2_forward.54} parent=0 // pred_check
    _
  $region15: #{cnn_encoder2_forward.54} parent=0 // pred_check_branch
    %124 = sbr.rel (0) target = $region17
  $region16: #{cnn_encoder2_forward.54} parent=0 // pred_region
    _
  $region17: #{cnn_encoder2_forward.54} parent=0 // pred_fallthru
    _
  // Predicated region
  $region18: #{cnn_encoder2_forward.54} parent=0 // pred_check
    _
  $region19: #{cnn_encoder2_forward.54} parent=0 // pred_check_branch
    %126 = sbr.rel (0) target = $region21
  $region20: #{cnn_encoder2_forward.54} parent=0 // pred_region
    _
  $region21: #{cnn_encoder2_forward.54} parent=0 // pred_fallthru
    _

// kernel: cnn_encoder2_forward.53
$region0: #{cnn_encoder2_forward.53}
  #allocation0 [shape = 'u32[]', space=smem, size = 0x4, offset = 0x4, fixed_abs, tag = 'smem constant byte address 0x4 - core index']
  #allocation1 [shape = 'u32[144,128]{1,0:T(1,128)}', space=vmem, size = 0x12000, scoped, tag = 'internal scratch']
  %s0 = inlined_call_operand.vmem [shape: bf16[64,16], index: 0, kind: input, shape index: {}]
  %s1 = inlined_call_operand.vmem [shape: bf16[16,128], index: 1, kind: input, shape index: {}]
  %s2 = inlined_call_operand.vmem [shape: f32[64,1], index: 2, kind: input, shape index: {}]
  %s3 = inlined_call_operand.vmem [shape: bf16[64,128], index: 3, kind: input, shape index: {}]
  %s4 = inlined_call_operand.vmem [shape: bf16[64,128], index: 4, kind: output, shape index: {}]
  %s5 = sld [smem:[#allocation0]]
  $region26: #{cnn_encoder2_forward.53} parent=0
    _
  %s7 = ssub.s32 1, %s5
  %s8 = scalar_select 0, %s7, %s5
  // Predicated region
  $region2: #{cnn_encoder2_forward.53} parent=0 // pred_check
    _
  $region3: #{cnn_encoder2_forward.53} parent=0 // pred_check_branch
    %10 = sbr.rel (0) target = $region5
  $region4: #{cnn_encoder2_forward.53} parent=0 // pred_region
    _
  $region5: #{cnn_encoder2_forward.53} parent=0 // pred_fallthru
    _
  // Predicated region
  $region6: #{cnn_encoder2_forward.53} parent=0 // pred_check
    _
  $region7: #{cnn_encoder2_forward.53} parent=0 // pred_check_branch
    %12 = sbr.rel (0) target = $region9
  $region8: #{cnn_encoder2_forward.53} parent=0 // pred_region
    _
  $region9: #{cnn_encoder2_forward.53} parent=0 // pred_fallthru
    _
  // Predicated region
  $region10: #{cnn_encoder2_forward.53} parent=0 // pred_check
    _
  $region11: #{cnn_encoder2_forward.53} parent=0 // pred_check_branch
    %14 = sbr.rel (0) target = $region13
  $region12: #{cnn_encoder2_forward.53} parent=0 // pred_region
    _
  $region13: #{cnn_encoder2_forward.53} parent=0 // pred_fallthru
    _
  // Predicated region
  $region14: #{cnn_encoder2_forward.53} parent=0 // pred_check
    _
  $region15: #{cnn_encoder2_forward.53} parent=0 // pred_check_branch
    %16 = sbr.rel (0) target = $region17
  $region16: #{cnn_encoder2_forward.53} parent=0 // pred_region
    _
  $region17: #{cnn_encoder2_forward.53} parent=0 // pred_fallthru
    _
  %v18 = vld [vmem:[%s0] sm:$0xf]
  %v19 = vld [vmem:[%s0 + $0x4] sm:$0xf]
  %v20 = vld [vmem:[%s0 + $0x8] sm:$0xf]
  %v21 = vld [vmem:[%s0 + $0xc] sm:$0xf]
  %v22 = vld [vmem:[%s0 + $0x10] sm:$0xf]
  %v23 = vld [vmem:[%s0 + $0x14] sm:$0xf]
  %v24 = vld [vmem:[%s0 + $0x18] sm:$0xf]
  %v25 = vld [vmem:[%s0 + $0x1c] sm:$0xf]
  %v26 = vld [vmem:[%s1] sm:$0xf]
  %v27 = vld [vmem:[%s1 + $0x4] sm:$0xf]
  %v28 = vld [vmem:[%s2] sm:$0xff]
  %v29 = vld [vmem:[%s2 + $0x8] sm:$0xff]
  %v30 = vld [vmem:[%s2 + $0x10] sm:$0xff]
  %v31 = vld [vmem:[%s2 + $0x18] sm:$0xff]
  %v32 = vld [vmem:[%s2 + $0x20] sm:$0xff]
  %v33 = vld [vmem:[%s2 + $0x28] sm:$0xff]
  %v34 = vld [vmem:[%s2 + $0x30] sm:$0xff]
  %v35 = vld [vmem:[%s2 + $0x38] sm:$0xff]
  %37 = vset.pattern.permute.xlu0 0
  %38 = vperm.xlu0 %37, %v28
  %v39 = vpop.permute.xlu0 %38
  %42 = vset.pattern.permute.xlu0 0
  %43 = vperm.xlu0 %42, %v29
  %v44 = vpop.permute.xlu0 %43
  %47 = vset.pattern.permute.xlu0 0
  %48 = vperm.xlu0 %47, %v30
  %v49 = vpop.permute.xlu0 %48
  %52 = vset.pattern.permute.xlu0 0
  %53 = vperm.xlu0 %52, %v31
  %v54 = vpop.permute.xlu0 %53
  %57 = vset.pattern.permute.xlu0 0
  %58 = vperm.xlu0 %57, %v32
  %v59 = vpop.permute.xlu0 %58
  %62 = vset.pattern.permute.xlu0 0
  %63 = vperm.xlu0 %62, %v33
  %v64 = vpop.permute.xlu0 %63
  %67 = vset.pattern.permute.xlu0 0
  %68 = vperm.xlu0 %67, %v34
  %v69 = vpop.permute.xlu0 %68
  %72 = vset.pattern.permute.xlu0 0
  %73 = vperm.xlu0 %72, %v35
  %v74 = vpop.permute.xlu0 %73
  %v84 = vunpack.c.l.b16 %v18
  %v85 = vunpack.c.l.b16 %v19
  %v86 = vunpack.c.l.b16 %v20
  %v87 = vunpack.c.l.b16 %v21
  %v88 = vunpack.c.l.b16 %v22
  %v89 = vunpack.c.l.b16 %v23
  %v90 = vunpack.c.l.b16 %v24
  %v91 = vunpack.c.l.b16 %v25
  %v92 = vpack.c.b16 %v85, %v84
  %v93 = vpack.c.b16 %v87, %v86
  %v94 = vpack.c.b16 %v89, %v88
  %v95 = vpack.c.b16 %v91, %v90
  %v98 = vunpack.c.l.b16 %v26
  %v99 = vunpack.c.l.b16 %v27
  %v100 = vpack.c.b16 %v99, %v98
  %vm102 = vcmask 130048
  %v104 = vsel %vm102, %v92, 0
  %v107 = vsel %vm102, %v93, 0
  %v110 = vsel %vm102, %v94, 0
  %v113 = vsel %vm102, %v95, 0
  %115 = vmatprep.subr.bf16.mxu0 0
  %116 = vmatpush1.bf16.msra.mxu0 %v100
  %117 = vmatprep.subr.bf16.mxu0 0
  %118 = vmatpush1.bf16.msra.mxu0 0
  %119 = vmatprep.subr.bf16.mxu0 0
  %120 = vmatpush1.bf16.msra.mxu0 0
  %121 = vmatprep.subr.bf16.mxu0 0
  %122 = vmatpush1.bf16.msra.mxu0 0
  %123 = vmatprep.subr.bf16.mxu0 0
  %124 = vmatpush1.bf16.msra.mxu0 0
  %125 = vmatprep.subr.bf16.mxu0 0
  %126 = vmatpush1.bf16.msra.mxu0 0
  %127 = vmatprep.subr.bf16.mxu0 0
  %128 = vmatpush1.bf16.msra.mxu0 0
  %129 = vmatprep.subr.bf16.mxu0 0
  %130 = vmatpush1.bf16.msra.mxu0 0
  %131 = vmatprep.subr.bf16.mxu0 0
  %132 = vmatpush1.bf16.msra.mxu0 0
  %133 = vmatprep.subr.bf16.mxu0 0
  %134 = vmatpush1.bf16.msra.mxu0 0
  %135 = vmatprep.subr.bf16.mxu0 0
  %136 = vmatpush1.bf16.msra.mxu0 0
  %137 = vmatprep.subr.bf16.mxu0 0
  %138 = vmatpush1.bf16.msra.mxu0 0
  %139 = vmatprep.subr.bf16.mxu0 0
  %140 = vmatpush1.bf16.msra.mxu0 0
  %141 = vmatprep.subr.bf16.mxu0 0
  %142 = vmatpush1.bf16.msra.mxu0 0
  %143 = vmatprep.subr.bf16.mxu0 0
  %144 = vmatpush1.bf16.msra.mxu0 0
  %145 = vmatprep.subr.bf16.mxu0 0
  %146 = vmatpush1.bf16.msra.mxu0 0
  %147 = vmatprep.mubr.bf16.mxu0 0
  %148 = vmatmul.mubr.bf16.gmra.mrb[0].mxu0 %v104
  %v149 = vpop.f32.mrb[0].mxu0
  %v150 = vadd.f32 %v39, %v149
  %v151 = vpop.f32.mrb[0].mxu0
  %v152 = vpop.f32.mrb[0].mxu0
  %v153 = vadd.f32 %v44, %v152
  %v154 = vpop.f32.mrb[0].mxu0
  %155 = vmatprep.mubr.bf16.mxu0 0
  %156 = vmatmul.mubr.bf16.gmra.mrb[0].mxu0 %v107
  %v157 = vpop.f32.mrb[0].mxu0
  %v158 = vadd.f32 %v49, %v157
  %v159 = vpop.f32.mrb[0].mxu0
  %v160 = vpop.f32.mrb[0].mxu0
  %v161 = vadd.f32 %v54, %v160
  %v162 = vpop.f32.mrb[0].mxu0
  %163 = vmatprep.mubr.bf16.mxu0 0
  %164 = vmatmul.mubr.bf16.gmra.mrb[0].mxu0 %v110
  %v165 = vpop.f32.mrb[0].mxu0
  %v166 = vadd.f32 %v59, %v165
  %v167 = vpop.f32.mrb[0].mxu0
  %v168 = vpop.f32.mrb[0].mxu0
  %v169 = vadd.f32 %v64, %v168
  %v170 = vpop.f32.mrb[0].mxu0
  %171 = vmatprep.mubr.bf16.mxu0 0
  %172 = vmatmul.mubr.bf16.gmra.mrb[0].mxu0 %v113
  %v173 = vpop.f32.mrb[0].mxu0
  %v174 = vadd.f32 %v69, %v173
  %v175 = vpop.f32.mrb[0].mxu0
  %v176 = vpop.f32.mrb[0].mxu0
  %v177 = vadd.f32 %v74, %v176
  %v178 = vpop.f32.mrb[0].mxu0
  %179 = vdwg.mxu0
  %v180 = vld [vmem:[%s3] sm:$0xf]
  %v181 = vld [vmem:[%s3 + $0x4] sm:$0xf]
  %v182 = vld [vmem:[%s3 + $0x8] sm:$0xf]
  %v183 = vld [vmem:[%s3 + $0xc] sm:$0xf]
  %v184 = vld [vmem:[%s3 + $0x10] sm:$0xf]
  %v185 = vld [vmem:[%s3 + $0x14] sm:$0xf]
  %v186 = vld [vmem:[%s3 + $0x18] sm:$0xf]
  %v187 = vld [vmem:[%s3 + $0x1c] sm:$0xf]
  %v188 = vunpack.c.l.bf16 %v180
  %v189 = vunpack.c.l.bf16 %v181
  %v190 = vunpack.c.l.bf16 %v182
  %v191 = vunpack.c.l.bf16 %v183
  %v192 = vunpack.c.l.bf16 %v184
  %v193 = vunpack.c.l.bf16 %v185
  %v194 = vunpack.c.l.bf16 %v186
  %v195 = vunpack.c.l.bf16 %v187
  %v196 = vadd.f32 %v150, %v188
  %v197 = vadd.f32 %v153, %v189
  %v198 = vadd.f32 %v158, %v190
  %v199 = vadd.f32 %v161, %v191
  %v200 = vadd.f32 %v166, %v192
  %v201 = vadd.f32 %v169, %v193
  %v202 = vadd.f32 %v174, %v194
  %v203 = vadd.f32 %v177, %v195
  %v204 = vmax.f32 %v196, 0.0
  %v205 = vmax.f32 %v197, 0.0
  %v206 = vmax.f32 %v198, 0.0
  %v207 = vmax.f32 %v199, 0.0
  %v208 = vmax.f32 %v200, 0.0
  %v209 = vmax.f32 %v201, 0.0
  %v210 = vmax.f32 %v202, 0.0
  %v211 = vmax.f32 %v203, 0.0
  %v212 = vpack.c.bf16 %v205, %v204
  %v213 = vpack.c.bf16 %v207, %v206
  %v214 = vpack.c.bf16 %v209, %v208
  %v215 = vpack.c.bf16 %v211, %v210
  %v220 = vunpack.c.l.b16 %v212
  %v221 = vunpack.c.h.b16 %v212
  %v222 = vunpack.c.l.b16 %v213
  %v223 = vunpack.c.h.b16 %v213
  %v224 = vunpack.c.l.b16 %v214
  %v225 = vunpack.c.h.b16 %v214
  %v226 = vunpack.c.l.b16 %v215
  %v227 = vunpack.c.h.b16 %v215
  %v228 = vpack.c.b16 %v220, %v220
  %v229 = vpack.c.b16 %v221, %v221
  %v230 = vpack.c.b16 %v222, %v222
  %v231 = vpack.c.b16 %v223, %v223
  %v232 = vpack.c.b16 %v224, %v224
  %v233 = vpack.c.b16 %v225, %v225
  %v234 = vpack.c.b16 %v226, %v226
  %v235 = vpack.c.b16 %v227, %v227
  %244 = vst [vmem:[%s4] sm:$0xf] %v228
  %245 = vst [vmem:[%s4 + $0x4] sm:$0xf] %v229
  %246 = vst [vmem:[%s4 + $0x8] sm:$0xf] %v230
  %247 = vst [vmem:[%s4 + $0xc] sm:$0xf] %v231
  %248 = vst [vmem:[%s4 + $0x10] sm:$0xf] %v232
  %249 = vst [vmem:[%s4 + $0x14] sm:$0xf] %v233
  %250 = vst [vmem:[%s4 + $0x18] sm:$0xf] %v234
  %251 = vst [vmem:[%s4 + $0x1c] sm:$0xf] %v235
  // Predicated region
  $region18: #{cnn_encoder2_forward.53} parent=0 // pred_check
    _
  $region19: #{cnn_encoder2_forward.53} parent=0 // pred_check_branch
    %253 = sbr.rel (0) target = $region21
  $region20: #{cnn_encoder2_forward.53} parent=0 // pred_region
    _
  $region21: #{cnn_encoder2_forward.53} parent=0 // pred_fallthru
    _
  // Predicated region
  $region22: #{cnn_encoder2_forward.53} parent=0 // pred_check
    _
  $region23: #{cnn_encoder2_forward.53} parent=0 // pred_check_branch
    %255 = sbr.rel (0) target = $region25
  $region24: #{cnn_encoder2_forward.53} parent=0 // pred_region
    _
  $region25: #{cnn_encoder2_forward.53} parent=0 // pred_fallthru
    _

// kernel: cnn_encoder2_forward.75
$region0: #{cnn_encoder2_forward.75}
  #allocation0 [shape = 'u32[]', space=smem, size = 0x4, offset = 0x4, fixed_abs, tag = 'smem constant byte address 0x4 - core index']
  #allocation1 [shape = 'u32[144,128]{1,0:T(1,128)}', space=vmem, size = 0x12000, scoped, tag = 'internal scratch']
  %s0 = inlined_call_operand.vmem [shape: bf16[128,16], index: 0, kind: input, shape index: {}]
  %s1 = inlined_call_operand.vmem [shape: bf16[16,128], index: 1, kind: input, shape index: {}]
  %s2 = inlined_call_operand.vmem [shape: f32[1,128], index: 2, kind: input, shape index: {}]
  %s3 = inlined_call_operand.vmem [shape: f32[128,128], index: 3, kind: output, shape index: {}]
  %s4 = sld [smem:[#allocation0]]
  $region22: #{cnn_encoder2_forward.75} parent=0
    _
  %s6 = ssub.s32 1, %s4
  %s7 = scalar_select 0, %s6, %s4
  // Predicated region
  $region2: #{cnn_encoder2_forward.75} parent=0 // pred_check
    _
  $region3: #{cnn_encoder2_forward.75} parent=0 // pred_check_branch
    %9 = sbr.rel (0) target = $region5
  $region4: #{cnn_encoder2_forward.75} parent=0 // pred_region
    _
  $region5: #{cnn_encoder2_forward.75} parent=0 // pred_fallthru
    _
  // Predicated region
  $region6: #{cnn_encoder2_forward.75} parent=0 // pred_check
    _
  $region7: #{cnn_encoder2_forward.75} parent=0 // pred_check_branch
    %11 = sbr.rel (0) target = $region9
  $region8: #{cnn_encoder2_forward.75} parent=0 // pred_region
    _
  $region9: #{cnn_encoder2_forward.75} parent=0 // pred_fallthru
    _
  // Predicated region
  $region10: #{cnn_encoder2_forward.75} parent=0 // pred_check
    _
  $region11: #{cnn_encoder2_forward.75} parent=0 // pred_check_branch
    %13 = sbr.rel (0) target = $region13
  $region12: #{cnn_encoder2_forward.75} parent=0 // pred_region
    _
  $region13: #{cnn_encoder2_forward.75} parent=0 // pred_fallthru
    _
  %v15 = vld [vmem:[%s0] sm:$0xf]
  %v16 = vld [vmem:[%s0 + $0x4] sm:$0xf]
  %v17 = vld [vmem:[%s0 + $0x8] sm:$0xf]
  %v18 = vld [vmem:[%s0 + $0xc] sm:$0xf]
  %v19 = vld [vmem:[%s0 + $0x10] sm:$0xf]
  %v20 = vld [vmem:[%s0 + $0x14] sm:$0xf]
  %v21 = vld [vmem:[%s0 + $0x18] sm:$0xf]
  %v22 = vld [vmem:[%s0 + $0x1c] sm:$0xf]
  %v23 = vld [vmem:[%s0 + $0x20] sm:$0xf]
  %v24 = vld [vmem:[%s0 + $0x24] sm:$0xf]
  %v25 = vld [vmem:[%s0 + $0x28] sm:$0xf]
  %v26 = vld [vmem:[%s0 + $0x2c] sm:$0xf]
  %v27 = vld [vmem:[%s0 + $0x30] sm:$0xf]
  %v28 = vld [vmem:[%s0 + $0x34] sm:$0xf]
  %v29 = vld [vmem:[%s0 + $0x38] sm:$0xf]
  %v30 = vld [vmem:[%s0 + $0x3c] sm:$0xf]
  %v31 = vld [vmem:[%s1] sm:$0xf]
  %v32 = vld [vmem:[%s1 + $0x4] sm:$0xf]
  %v33 = vld [vmem:[%s2] sm:$0x1]
  %v35 = vlaneseq
  %v36 = vshrl.u32 %v35, 7
  %v37 = vsub.s32 0, %v36
  %v38 = vrot.slane %v33, %v37
  %v56 = vunpack.c.l.b16 %v15
  %v57 = vunpack.c.l.b16 %v16
  %v58 = vunpack.c.l.b16 %v17
  %v59 = vunpack.c.l.b16 %v18
  %v60 = vunpack.c.l.b16 %v19
  %v61 = vunpack.c.l.b16 %v20
  %v62 = vunpack.c.l.b16 %v21
  %v63 = vunpack.c.l.b16 %v22
  %v64 = vunpack.c.l.b16 %v23
  %v65 = vunpack.c.l.b16 %v24
  %v66 = vunpack.c.l.b16 %v25
  %v67 = vunpack.c.l.b16 %v26
  %v68 = vunpack.c.l.b16 %v27
  %v69 = vunpack.c.l.b16 %v28
  %v70 = vunpack.c.l.b16 %v29
  %v71 = vunpack.c.l.b16 %v30
  %v72 = vpack.c.b16 %v57, %v56
  %v73 = vpack.c.b16 %v59, %v58
  %v74 = vpack.c.b16 %v61, %v60
  %v75 = vpack.c.b16 %v63, %v62
  %v76 = vpack.c.b16 %v65, %v64
  %v77 = vpack.c.b16 %v67, %v66
  %v78 = vpack.c.b16 %v69, %v68
  %v79 = vpack.c.b16 %v71, %v70
  %v82 = vunpack.c.l.b16 %v31
  %v83 = vunpack.c.l.b16 %v32
  %v84 = vpack.c.b16 %v83, %v82
  %vm86 = vcmask 130048
  %v88 = vsel %vm86, %v72, 0
  %v91 = vsel %vm86, %v73, 0
  %v94 = vsel %vm86, %v74, 0
  %v97 = vsel %vm86, %v75, 0
  %v100 = vsel %vm86, %v76, 0
  %v103 = vsel %vm86, %v77, 0
  %v106 = vsel %vm86, %v78, 0
  %v109 = vsel %vm86, %v79, 0
  %111 = vmatprep.subr.bf16.mxu0 0
  %112 = vmatpush1.bf16.msra.mxu0 %v84
  %113 = vmatprep.subr.bf16.mxu0 0
  %114 = vmatpush1.bf16.msra.mxu0 0
  %115 = vmatprep.subr.bf16.mxu0 0
  %116 = vmatpush1.bf16.msra.mxu0 0
  %117 = vmatprep.subr.bf16.mxu0 0
  %118 = vmatpush1.bf16.msra.mxu0 0
  %119 = vmatprep.subr.bf16.mxu0 0
  %120 = vmatpush1.bf16.msra.mxu0 0
  %121 = vmatprep.subr.bf16.mxu0 0
  %122 = vmatpush1.bf16.msra.mxu0 0
  %123 = vmatprep.subr.bf16.mxu0 0
  %124 = vmatpush1.bf16.msra.mxu0 0
  %125 = vmatprep.subr.bf16.mxu0 0
  %126 = vmatpush1.bf16.msra.mxu0 0
  %127 = vmatprep.subr.bf16.mxu0 0
  %128 = vmatpush1.bf16.msra.mxu0 0
  %129 = vmatprep.subr.bf16.mxu0 0
  %130 = vmatpush1.bf16.msra.mxu0 0
  %131 = vmatprep.subr.bf16.mxu0 0
  %132 = vmatpush1.bf16.msra.mxu0 0
  %133 = vmatprep.subr.bf16.mxu0 0
  %134 = vmatpush1.bf16.msra.mxu0 0
  %135 = vmatprep.subr.bf16.mxu0 0
  %136 = vmatpush1.bf16.msra.mxu0 0
  %137 = vmatprep.subr.bf16.mxu0 0
  %138 = vmatpush1.bf16.msra.mxu0 0
  %139 = vmatprep.subr.bf16.mxu0 0
  %140 = vmatpush1.bf16.msra.mxu0 0
  %141 = vmatprep.subr.bf16.mxu0 0
  %142 = vmatpush1.bf16.msra.mxu0 0
  %143 = vmatprep.mubr.bf16.mxu0 0
  %144 = vmatmul.mubr.bf16.gmra.mrb[0].mxu0 %v88
  %v145 = vpop.f32.mrb[0].mxu0
  %v146 = vadd.f32 %v38, %v145
  %v147 = vpop.f32.mrb[0].mxu0
  %v148 = vpop.f32.mrb[0].mxu0
  %v149 = vadd.f32 %v38, %v148
  %v150 = vpop.f32.mrb[0].mxu0
  %151 = vmatprep.mubr.bf16.mxu0 0
  %152 = vmatmul.mubr.bf16.gmra.mrb[0].mxu0 %v91
  %v153 = vpop.f32.mrb[0].mxu0
  %v154 = vadd.f32 %v38, %v153
  %v155 = vpop.f32.mrb[0].mxu0
  %v156 = vpop.f32.mrb[0].mxu0
  %v157 = vadd.f32 %v38, %v156
  %v158 = vpop.f32.mrb[0].mxu0
  %159 = vmatprep.mubr.bf16.mxu0 0
  %160 = vmatmul.mubr.bf16.gmra.mrb[0].mxu0 %v94
  %v161 = vpop.f32.mrb[0].mxu0
  %v162 = vadd.f32 %v38, %v161
  %v163 = vpop.f32.mrb[0].mxu0
  %v164 = vpop.f32.mrb[0].mxu0
  %v165 = vadd.f32 %v38, %v164
  %v166 = vpop.f32.mrb[0].mxu0
  %167 = vmatprep.mubr.bf16.mxu0 0
  %168 = vmatmul.mubr.bf16.gmra.mrb[0].mxu0 %v97
  %v169 = vpop.f32.mrb[0].mxu0
  %v170 = vadd.f32 %v38, %v169
  %v171 = vpop.f32.mrb[0].mxu0
  %v172 = vpop.f32.mrb[0].mxu0
  %v173 = vadd.f32 %v38, %v172
  %v174 = vpop.f32.mrb[0].mxu0
  %175 = vmatprep.mubr.bf16.mxu0 0
  %176 = vmatmul.mubr.bf16.gmra.mrb[0].mxu0 %v100
  %v177 = vpop.f32.mrb[0].mxu0
  %v178 = vadd.f32 %v38, %v177
  %v179 = vpop.f32.mrb[0].mxu0
  %v180 = vpop.f32.mrb[0].mxu0
  %v181 = vadd.f32 %v38, %v180
  %v182 = vpop.f32.mrb[0].mxu0
  %183 = vmatprep.mubr.bf16.mxu0 0
  %184 = vmatmul.mubr.bf16.gmra.mrb[0].mxu0 %v103
  %v185 = vpop.f32.mrb[0].mxu0
  %v186 = vadd.f32 %v38, %v185
  %v187 = vpop.f32.mrb[0].mxu0
  %v188 = vpop.f32.mrb[0].mxu0
  %v189 = vadd.f32 %v38, %v188
  %v190 = vpop.f32.mrb[0].mxu0
  %191 = vmatprep.mubr.bf16.mxu0 0
  %192 = vmatmul.mubr.bf16.gmra.mrb[0].mxu0 %v106
  %v193 = vpop.f32.mrb[0].mxu0
  %v194 = vadd.f32 %v38, %v193
  %v195 = vpop.f32.mrb[0].mxu0
  %v196 = vpop.f32.mrb[0].mxu0
  %v197 = vadd.f32 %v38, %v196
  %v198 = vpop.f32.mrb[0].mxu0
  %199 = vmatprep.mubr.bf16.mxu0 0
  %200 = vmatmul.mubr.bf16.gmra.mrb[0].mxu0 %v109
  %v201 = vpop.f32.mrb[0].mxu0
  %v202 = vadd.f32 %v38, %v201
  %v203 = vpop.f32.mrb[0].mxu0
  %v204 = vpop.f32.mrb[0].mxu0
  %v205 = vadd.f32 %v38, %v204
  %v206 = vpop.f32.mrb[0].mxu0
  %207 = vdwg.mxu0
  %208 = vst [vmem:[%s3] sm:$0xff] %v146
  %209 = vst [vmem:[%s3 + $0x8] sm:$0xff] %v149
  %210 = vst [vmem:[%s3 + $0x10] sm:$0xff] %v154
  %211 = vst [vmem:[%s3 + $0x18] sm:$0xff] %v157
  %212 = vst [vmem:[%s3 + $0x20] sm:$0xff] %v162
  %213 = vst [vmem:[%s3 + $0x28] sm:$0xff] %v165
  %214 = vst [vmem:[%s3 + $0x30] sm:$0xff] %v170
  %215 = vst [vmem:[%s3 + $0x38] sm:$0xff] %v173
  %216 = vst [vmem:[%s3 + $0x40] sm:$0xff] %v178
  %217 = vst [vmem:[%s3 + $0x48] sm:$0xff] %v181
  %218 = vst [vmem:[%s3 + $0x50] sm:$0xff] %v186
  %219 = vst [vmem:[%s3 + $0x58] sm:$0xff] %v189
  %220 = vst [vmem:[%s3 + $0x60] sm:$0xff] %v194
  %221 = vst [vmem:[%s3 + $0x68] sm:$0xff] %v197
  %222 = vst [vmem:[%s3 + $0x70] sm:$0xff] %v202
  %223 = vst [vmem:[%s3 + $0x78] sm:$0xff] %v205
  // Predicated region
  $region14: #{cnn_encoder2_forward.75} parent=0 // pred_check
    _
  $region15: #{cnn_encoder2_forward.75} parent=0 // pred_check_branch
    %225 = sbr.rel (0) target = $region17
  $region16: #{cnn_encoder2_forward.75} parent=0 // pred_region
    _
  $region17: #{cnn_encoder2_forward.75} parent=0 // pred_fallthru
    _
  // Predicated region
  $region18: #{cnn_encoder2_forward.75} parent=0 // pred_check
    _
  $region19: #{cnn_encoder2_forward.75} parent=0 // pred_check_branch
    %227 = sbr.rel (0) target = $region21
  $region20: #{cnn_encoder2_forward.75} parent=0 // pred_region
    _
  $region21: #{cnn_encoder2_forward.75} parent=0 // pred_fallthru
    _

</llo_original>
